<compile_context>
chip_gen: v7x
topology: tpu7x:2x2x1
jax: 0.10.0
libtpu: 0.0.40
codegen_flags: <defaults>
</compile_context>

<pallas_src>
import functools

import jax
import jax.numpy as jnp
from jax.experimental import pallas as pl
from jax.experimental.pallas import tpu as pltpu

_MIB = 1024 * 1024


# ---------------------------------------------------------------------------
# Kernel
# ---------------------------------------------------------------------------
def _attention_kernel(num_heads,
                      x_ref,      # (Bt, N, C)  fp32
                      wqkv_ref,   # (C, 3C)     bf16  (1/sqrt(dh) folded into Q cols)
                      wproj_ref,  # (C, C)      bf16
                      bproj_ref,  # (1, C)      fp32
                      o_ref):     # (Bt, N, C)  fp32
    Bt, N, C = x_ref.shape
    H = num_heads
    dh = C // H

    # ---- fused QKV projection: bf16 MXU operands, fp32 accumulation, one
    #      bf16 cast (no fp32 qkv intermediate kept around). ----
    x2d = x_ref[...].reshape(Bt * N, C).astype(jnp.bfloat16)
    qkv = jnp.dot(x2d, wqkv_ref[...],
                  preferred_element_type=jnp.float32).astype(jnp.bfloat16)   # (Bt*N, 3C)

    # ---- head split: (Bt*N, C) -> (H*Bt, N, dh), head/batch on the batch axis.
    #      Lane slices are taken once per tensor (not per matmul); the reshape
    #      only regroups major dims (N is a multiple of 8). ----
    def to_heads(t2d):
        th = jnp.stack([t2d[:, h * dh:(h + 1) * dh] for h in range(H)], axis=0)
        return th.reshape(H * Bt, N, dh)

    qh = to_heads(qkv[:, 0:C])
    kh = to_heads(qkv[:, C:2 * C])
    vh = to_heads(qkv[:, 2 * C:3 * C])

    # ---- one batched NT scores dot over all (head, batch) pairs at once ----
    # TODO(synk): for large N replace the materialized (.., N, N) score tile
    # with a flash-style KV-blocked softmax (running max/sum VMEM accumulators).
    s = jnp.einsum("bqd,bkd->bqk", qh, kh,
                   preferred_element_type=jnp.float32)            # (H*Bt, N, N)
    s = s - jnp.max(s, axis=-1, keepdims=True)
    p = jnp.exp(s)                                                # fp32 softmax (v5e-safe)
    # approx reciprocal (EUP slot): rows sum to 1 within ~1e-3 rel. error.
    p = p * pl.reciprocal(jnp.sum(p, axis=-1, keepdims=True), approx=True)

    o = jnp.einsum("bqk,bkd->bqd", p.astype(jnp.bfloat16), vh,
                   preferred_element_type=jnp.float32)            # (H*Bt, N, dh)

    # ---- reassemble heads along the lane axis -> lane-dense (Bt*N, C) block,
    #      consumed directly by the projection (no masked staging stores). ----
    o = o.reshape(H, Bt * N, dh)
    attn2d = jnp.concatenate([o[h] for h in range(H)], axis=-1).astype(jnp.bfloat16)

    out = jnp.dot(attn2d, wproj_ref[...],
                  preferred_element_type=jnp.float32) + bproj_ref[...]
    # attn_drop / proj_drop are identity in eval mode.
    o_ref[...] = out.reshape(Bt, N, C).astype(o_ref.dtype)


# ---------------------------------------------------------------------------
# Wrapper: VMEM budgeting, Bt selection, pallas_call
# ---------------------------------------------------------------------------
def _vmem_capacity_bytes():
    try:
        return int(pltpu.get_tpu_info().vmem_capacity_bytes)
    except Exception:
        return 64 * _MIB          # conservative default (v7x per-TensorCore)


def _vmem_step_bytes(Bt, N, C, H):
    """Superset accounting of one grid step's VMEM footprint (incl. compiler-held
    intermediates), weights counted single-buffered."""
    rows = Bt * N
    tiles = 2 * 2 * rows * C * 4                 # x + out tiles, double-buffered fp32
    weights = 2 * (3 * C * C + C * C) + 4 * C    # bf16 w_qkv + w_proj, fp32 bias
    qkv = rows * 3 * C * (4 + 2)                 # fp32 dot result + bf16 cast
    heads = 3 * rows * C * 2                     # head-major q/k/v bf16 copies
    attn = Bt * H * N * N * (4 + 4 + 2)          # s fp32, p fp32, p bf16
    epilog = rows * C * (4 + 2 + 4)              # o fp32, attn2d bf16, out fp32
    return tiles + weights + qkv + heads + attn + epilog


def _pick_batch_block(B, N, C, H, budget, target_rows=256):
    """Largest Bt (divisor of B) whose step footprint fits `budget`, stopping
    once Bt*N reaches the MXU M target (256; also a multiple of v5e's 128) and
    keeping >= 2 grid steps (megacore + pipeline overlap) whenever B allows."""
    best = 1
    for d in range(1, B + 1):
        if B % d:
            continue
        if _vmem_step_bytes(d, N, C, H) > budget:
            break
        if d > 1 and B // d < 2:
            break
        best = d
        if d * N >= target_rows:
            break
    return best


def attention_forward(x, params, num_heads, batch_block=None):
    """Self-attention (qkv_fuse=True, qkv_bias=False, mask=None).

    x: (B, N, C) float32.  Returns (B, N, C) float32.
    """
    B, N, C = x.shape
    assert C % num_heads == 0
    dh = C // num_heads
    scale = dh ** -0.5

    # Fold 1/sqrt(dh) into the Q columns of the fused QKV weight (one-time fp32
    # scale), then ship matmul weights as bf16; keep the projection bias fp32.
    w_qkv = params["w_qkv"].astype(jnp.float32)
    w_qkv = w_qkv.at[:, 0:C].multiply(scale).astype(jnp.bfloat16)   # (C, 3C)
    w_proj = params["w_proj"].astype(jnp.bfloat16)                  # (C, C)
    b_proj = params["b_proj"].astype(jnp.float32).reshape(1, C)     # (1, C)

    vmem_cap = _vmem_capacity_bytes()
    budget = (vmem_cap - 8 * _MIB) // 2          # leave room for pipeline + scratch
    Bt = _pick_batch_block(B, N, C, num_heads, budget) if batch_block is None else batch_block
    assert B % Bt == 0

    est = _vmem_step_bytes(Bt, N, C, num_heads)
    vmem_limit = int(min(max(2 * est, 32 * _MIB), vmem_cap - 8 * _MIB))

    kernel = functools.partial(_attention_kernel, num_heads)

    def build(single_buffer_weights):
        def w_spec(shape):
            # Grid-invariant index_map: weights are DMA'd once across the grid.
            if single_buffer_weights:
                return pl.BlockSpec(shape, lambda i: (0, 0),
                                    pipeline_mode=pl.Buffered(1))
            return pl.BlockSpec(shape, lambda i: (0, 0))

        in_specs = [
            pl.BlockSpec((Bt, N, C), lambda i: (i, 0, 0)),
            w_spec(w_qkv.shape),
            w_spec(w_proj.shape),
            w_spec(b_proj.shape),
        ]
        out_specs = pl.BlockSpec((Bt, N, C), lambda i: (i, 0, 0))

        return pl.pallas_call(
            kernel,
            out_shape=jax.ShapeDtypeStruct((B, N, C), jnp.float32),
            grid_spec=pltpu.PrefetchScalarGridSpec(
                num_scalar_prefetch=0,
                grid=(B // Bt,),
                in_specs=in_specs,
                out_specs=out_specs,
            ),
            compiler_params=pltpu.CompilerParams(
                dimension_semantics=("parallel",),
                vmem_limit_bytes=vmem_limit,
            ),
        )

    try:
        # Preferred: single-buffered (grid-invariant) weights.
        return build(single_buffer_weights=True)(x, w_qkv, w_proj, b_proj)
    except Exception:
        # pipeline_mode / pl.Buffered(1) unsupported here: fall back to default
        # (double-buffered) weight specs.  Purely a VMEM-footprint difference.
        return build(single_buffer_weights=False)(x, w_qkv, w_proj, b_proj)


# ---------------------------------------------------------------------------
# Plain-JAX fp32 reference (matches the PyTorch fused-QKV forward)
# ---------------------------------------------------------------------------
def attention_reference(x, params, num_heads):
    B, N, C = x.shape
    dh = C // num_heads
    scale = dh ** -0.5
    qkv = jnp.einsum("bnc,cd->bnd", x, params["w_qkv"])
    qkv = qkv.reshape(B, N, 3, num_heads, dh).transpose(2, 0, 3, 1, 4)
    q, k, v = qkv[0], qkv[1], qkv[2]                       # (B, H, N, dh)
    attn = jnp.einsum("bhnd,bhmd->bhnm", q, k) * scale
    attn = jax.nn.softmax(attn, axis=-1)
    out = jnp.einsum("bhnm,bhmd->bhnd", attn, v)
    out = out.transpose(0, 2, 1, 3).reshape(B, N, C)
    return jnp.einsum("bnc,cd->bnd", out, params["w_proj"]) + params["b_proj"][0]


def init_params(key, dim):
    k1, k2, k3 = jax.random.split(key, 3)
    std = 0.02
    # Linear weights stored as (in_features, out_features) = torch weight.T
    return {
        "w_qkv":  std * jax.random.normal(k1, (dim, 3 * dim), jnp.float32),
        "w_proj": std * jax.random.normal(k2, (dim, dim), jnp.float32),
        "b_proj": std * jax.random.normal(k3, (1, dim), jnp.float32),
    }


if __name__ == "__main__":
    # TODO(synk): mask branch (masked_fill additive -inf mask) and the
    # non-fused / cross-attention (key, value) path are not implemented; the
    # module is exercised on the default qkv_fuse self-attention, mask=None path.
    B, N, C, H = 2, 16, 128, 4     # batch, tokens, channels (lane-dense), heads
    key = jax.random.PRNGKey(0)
    kx, kp = jax.random.split(key)
    x = jax.random.normal(kx, (B, N, C), jnp.float32)
    params = init_params(kp, C)

    out = attention_forward(x, params, num_heads=H)
    out = jax.block_until_ready(out)
    assert out.shape == (B, N, C)

    ref = attention_reference(x, params, num_heads=H)
    max_err = float(jnp.max(jnp.abs(out - ref)))
    assert jnp.allclose(out, ref, atol=3e-2, rtol=3e-2), max_err

    print("KERNEL_OK")
</pallas_src>

<mosaic_0001>
module attributes {stable_mosaic.version = 11 : i64} {
  func.func @_attention_kernel(%arg0: i32, %arg1: memref<1x16x128xf32, #tpu.memory_space<vmem>>, %arg2: memref<128x384xbf16, #tpu.memory_space<vmem>>, %arg3: memref<128x128xbf16, #tpu.memory_space<vmem>>, %arg4: memref<1x128xf32, #tpu.memory_space<vmem>>, %arg5: memref<1x16x128xf32, #tpu.memory_space<vmem>>) attributes {dimension_semantics = [#tpu.dimension_semantics<parallel>], iteration_bounds = array<i64: 2>, scalar_prefetch = 0 : i64, scratch_operands = 0 : i64, tpu.core_type = #tpu.core_type<tc>, window_params = [{transform_indices = @transform_0, window_bounds = array<i64: 1, 16, 128>}, {pipeline_mode = #tpu.pipeline_mode<synchronous>, transform_indices = @transform_1, window_bounds = array<i64: 128, 384>}, {pipeline_mode = #tpu.pipeline_mode<synchronous>, transform_indices = @transform_2, window_bounds = array<i64: 128, 128>}, {pipeline_mode = #tpu.pipeline_mode<synchronous>, transform_indices = @transform_3, window_bounds = array<i64: 1, 128>}, {transform_indices = @transform_4, window_bounds = array<i64: 1, 16, 128>}]} {
    %c0 = arith.constant 0 : index
    %c0_0 = arith.constant 0 : index
    %c0_1 = arith.constant 0 : index
    %0 = vector.load %arg1[%c0, %c0_0, %c0_1] : memref<1x16x128xf32, #tpu.memory_space<vmem>>, vector<1x16x128xf32>
    %1 = vector.shape_cast %0 : vector<1x16x128xf32> to vector<16x128xf32>
    %2 = arith.truncf %1 : vector<16x128xf32> to vector<16x128xbf16>
    %c0_2 = arith.constant 0 : index
    %c0_3 = arith.constant 0 : index
    %3 = vector.load %arg2[%c0_2, %c0_3] : memref<128x384xbf16, #tpu.memory_space<vmem>>, vector<128x384xbf16>
    %cst = arith.constant dense<0.000000e+00> : vector<16x384xf32>
    %4 = tpu.matmul %2, %3, %cst {dimension_numbers = #tpu.dot_dimension_numbers<[1], [0], [0], [1], [0, 0, 1, 1], [], []>} : vector<16x128xbf16>, vector<128x384xbf16>, vector<16x384xf32> -> vector<16x384xf32>
    %5 = arith.truncf %4 : vector<16x384xf32> to vector<16x384xbf16>
    %6 = vector.extract_strided_slice %5 {offsets = [0, 0], sizes = [16, 128], strides = [1, 1]} : vector<16x384xbf16> to vector<16x128xbf16>
    %7 = vector.extract_strided_slice %6 {offsets = [0, 0], sizes = [16, 32], strides = [1, 1]} : vector<16x128xbf16> to vector<16x32xbf16>
    %8 = vector.extract_strided_slice %6 {offsets = [0, 32], sizes = [16, 32], strides = [1, 1]} : vector<16x128xbf16> to vector<16x32xbf16>
    %9 = vector.extract_strided_slice %6 {offsets = [0, 64], sizes = [16, 32], strides = [1, 1]} : vector<16x128xbf16> to vector<16x32xbf16>
    %10 = vector.extract_strided_slice %6 {offsets = [0, 96], sizes = [16, 32], strides = [1, 1]} : vector<16x128xbf16> to vector<16x32xbf16>
    %11 = vector.shape_cast %7 : vector<16x32xbf16> to vector<1x16x32xbf16>
    %12 = vector.shape_cast %8 : vector<16x32xbf16> to vector<1x16x32xbf16>
    %13 = vector.shape_cast %9 : vector<16x32xbf16> to vector<1x16x32xbf16>
    %14 = vector.shape_cast %10 : vector<16x32xbf16> to vector<1x16x32xbf16>
    %15 = tpu.concatenate %11, %12, %13, %14 in 0 : vector<1x16x32xbf16>, vector<1x16x32xbf16>, vector<1x16x32xbf16>, vector<1x16x32xbf16> -> vector<4x16x32xbf16>
    %16 = vector.extract_strided_slice %5 {offsets = [0, 128], sizes = [16, 128], strides = [1, 1]} : vector<16x384xbf16> to vector<16x128xbf16>
    %17 = vector.extract_strided_slice %16 {offsets = [0, 0], sizes = [16, 32], strides = [1, 1]} : vector<16x128xbf16> to vector<16x32xbf16>
    %18 = vector.extract_strided_slice %16 {offsets = [0, 32], sizes = [16, 32], strides = [1, 1]} : vector<16x128xbf16> to vector<16x32xbf16>
    %19 = vector.extract_strided_slice %16 {offsets = [0, 64], sizes = [16, 32], strides = [1, 1]} : vector<16x128xbf16> to vector<16x32xbf16>
    %20 = vector.extract_strided_slice %16 {offsets = [0, 96], sizes = [16, 32], strides = [1, 1]} : vector<16x128xbf16> to vector<16x32xbf16>
    %21 = vector.shape_cast %17 : vector<16x32xbf16> to vector<1x16x32xbf16>
    %22 = vector.shape_cast %18 : vector<16x32xbf16> to vector<1x16x32xbf16>
    %23 = vector.shape_cast %19 : vector<16x32xbf16> to vector<1x16x32xbf16>
    %24 = vector.shape_cast %20 : vector<16x32xbf16> to vector<1x16x32xbf16>
    %25 = tpu.concatenate %21, %22, %23, %24 in 0 : vector<1x16x32xbf16>, vector<1x16x32xbf16>, vector<1x16x32xbf16>, vector<1x16x32xbf16> -> vector<4x16x32xbf16>
    %26 = vector.extract_strided_slice %5 {offsets = [0, 256], sizes = [16, 128], strides = [1, 1]} : vector<16x384xbf16> to vector<16x128xbf16>
    %27 = vector.extract_strided_slice %26 {offsets = [0, 0], sizes = [16, 32], strides = [1, 1]} : vector<16x128xbf16> to vector<16x32xbf16>
    %28 = vector.extract_strided_slice %26 {offsets = [0, 32], sizes = [16, 32], strides = [1, 1]} : vector<16x128xbf16> to vector<16x32xbf16>
    %29 = vector.extract_strided_slice %26 {offsets = [0, 64], sizes = [16, 32], strides = [1, 1]} : vector<16x128xbf16> to vector<16x32xbf16>
    %30 = vector.extract_strided_slice %26 {offsets = [0, 96], sizes = [16, 32], strides = [1, 1]} : vector<16x128xbf16> to vector<16x32xbf16>
    %31 = vector.shape_cast %27 : vector<16x32xbf16> to vector<1x16x32xbf16>
    %32 = vector.shape_cast %28 : vector<16x32xbf16> to vector<1x16x32xbf16>
    %33 = vector.shape_cast %29 : vector<16x32xbf16> to vector<1x16x32xbf16>
    %34 = vector.shape_cast %30 : vector<16x32xbf16> to vector<1x16x32xbf16>
    %35 = tpu.concatenate %31, %32, %33, %34 in 0 : vector<1x16x32xbf16>, vector<1x16x32xbf16>, vector<1x16x32xbf16>, vector<1x16x32xbf16> -> vector<4x16x32xbf16>
    "tpu.trace_start"() <{level = 10 : i32, message = "bqd,bkd->bqk"}> : () -> ()
    %cst_4 = arith.constant dense<0.000000e+00> : vector<4x16x16xf32>
    %36 = tpu.matmul %15, %25, %cst_4 {dimension_numbers = #tpu.dot_dimension_numbers<[2], [2], [1], [1], [0, 0, 0, 1, 1, 1], [0], [0]>} : vector<4x16x32xbf16>, vector<4x16x32xbf16>, vector<4x16x16xf32> -> vector<4x16x16xf32>
    "tpu.trace_stop"() : () -> ()
    %cst_5 = arith.constant dense<0xFF800000> : vector<4x16xf32>
    %37 = vector.multi_reduction <maximumf>, %36, %cst_5 [2] : vector<4x16x16xf32> to vector<4x16xf32>
    %38 = vector.shape_cast %37 : vector<4x16xf32> to vector<4x16x1xf32>
    %39 = vector.broadcast %38 : vector<4x16x1xf32> to vector<4x16x16xf32>
    %40 = arith.subf %36, %39 : vector<4x16x16xf32>
    %41 = math.exp %40 : vector<4x16x16xf32>
    %cst_6 = arith.constant dense<0.000000e+00> : vector<4x16xf32>
    %42 = vector.multi_reduction <add>, %41, %cst_6 [2] : vector<4x16x16xf32> to vector<4x16xf32>
    %43 = vector.shape_cast %42 : vector<4x16xf32> to vector<4x16x1xf32>
    %44 = tpu.reciprocal %43 {approx = true} : vector<4x16x1xf32> -> vector<4x16x1xf32>
    %45 = vector.broadcast %44 : vector<4x16x1xf32> to vector<4x16x16xf32>
    %46 = arith.mulf %41, %45 : vector<4x16x16xf32>
    %47 = arith.truncf %46 : vector<4x16x16xf32> to vector<4x16x16xbf16>
    "tpu.trace_start"() <{level = 10 : i32, message = "bqk,bkd->bqd"}> : () -> ()
    %cst_7 = arith.constant dense<0.000000e+00> : vector<4x16x32xf32>
    %48 = tpu.matmul %47, %35, %cst_7 {dimension_numbers = #tpu.dot_dimension_numbers<[2], [1], [1], [2], [0, 0, 0, 1, 1, 2], [0], [0]>} : vector<4x16x16xbf16>, vector<4x16x32xbf16>, vector<4x16x32xf32> -> vector<4x16x32xf32>
    "tpu.trace_stop"() : () -> ()
    %49 = vector.extract_strided_slice %48 {offsets = [0, 0, 0], sizes = [1, 16, 32], strides = [1, 1, 1]} : vector<4x16x32xf32> to vector<1x16x32xf32>
    %50 = vector.shape_cast %49 : vector<1x16x32xf32> to vector<16x32xf32>
    %51 = vector.extract_strided_slice %48 {offsets = [1, 0, 0], sizes = [1, 16, 32], strides = [1, 1, 1]} : vector<4x16x32xf32> to vector<1x16x32xf32>
    %52 = vector.shape_cast %51 : vector<1x16x32xf32> to vector<16x32xf32>
    %53 = vector.extract_strided_slice %48 {offsets = [2, 0, 0], sizes = [1, 16, 32], strides = [1, 1, 1]} : vector<4x16x32xf32> to vector<1x16x32xf32>
    %54 = vector.shape_cast %53 : vector<1x16x32xf32> to vector<16x32xf32>
    %55 = vector.extract_strided_slice %48 {offsets = [3, 0, 0], sizes = [1, 16, 32], strides = [1, 1, 1]} : vector<4x16x32xf32> to vector<1x16x32xf32>
    %56 = vector.shape_cast %55 : vector<1x16x32xf32> to vector<16x32xf32>
    %57 = tpu.concatenate %50, %52, %54, %56 in 1 : vector<16x32xf32>, vector<16x32xf32>, vector<16x32xf32>, vector<16x32xf32> -> vector<16x128xf32>
    %58 = arith.truncf %57 : vector<16x128xf32> to vector<16x128xbf16>
    %c0_8 = arith.constant 0 : index
    %c0_9 = arith.constant 0 : index
    %59 = vector.load %arg3[%c0_8, %c0_9] : memref<128x128xbf16, #tpu.memory_space<vmem>>, vector<128x128xbf16>
    %cst_10 = arith.constant dense<0.000000e+00> : vector<16x128xf32>
    %60 = tpu.matmul %58, %59, %cst_10 {dimension_numbers = #tpu.dot_dimension_numbers<[1], [0], [0], [1], [0, 0, 1, 1], [], []>} : vector<16x128xbf16>, vector<128x128xbf16>, vector<16x128xf32> -> vector<16x128xf32>
    %c0_11 = arith.constant 0 : index
    %c0_12 = arith.constant 0 : index
    %61 = vector.load %arg4[%c0_11, %c0_12] : memref<1x128xf32, #tpu.memory_space<vmem>>, vector<1x128xf32>
    %62 = vector.broadcast %61 : vector<1x128xf32> to vector<16x128xf32>
    %63 = arith.addf %60, %62 : vector<16x128xf32>
    %64 = vector.shape_cast %63 : vector<16x128xf32> to vector<1x16x128xf32>
    %c0_13 = arith.constant 0 : index
    %c0_14 = arith.constant 0 : index
    %c0_15 = arith.constant 0 : index
    %65 = vector.load %arg5[%c0_13, %c0_14, %c0_15] : memref<1x16x128xf32, #tpu.memory_space<vmem>>, vector<1x16x128xf32>
    tpu.vector_store %arg5[%c0_13, %c0_14, %c0_15], %64 {strides = array<i32>} : memref<1x16x128xf32, #tpu.memory_space<vmem>>, vector<1x16x128xf32>,
    return
  }
  func.func @transform_0(%arg0: i32) -> (i32, i32, i32) {
    %c0_i32 = arith.constant 0 : i32
    %c0_i32_0 = arith.constant 0 : i32
    %c0_i32_1 = arith.constant 0 : i32
    return %arg0, %c0_i32, %c0_i32_0 : i32, i32, i32
  }
  func.func @transform_1(%arg0: i32) -> (i32, i32) {
    %c0_i32 = arith.constant 0 : i32
    %c0_i32_0 = arith.constant 0 : i32
    %c0_i32_1 = arith.constant 0 : i32
    return %c0_i32, %c0_i32_0 : i32, i32
  }
  func.func @transform_2(%arg0: i32) -> (i32, i32) {
    %c0_i32 = arith.constant 0 : i32
    %c0_i32_0 = arith.constant 0 : i32
    %c0_i32_1 = arith.constant 0 : i32
    return %c0_i32, %c0_i32_0 : i32, i32
  }
  func.func @transform_3(%arg0: i32) -> (i32, i32) {
    %c0_i32 = arith.constant 0 : i32
    %c0_i32_0 = arith.constant 0 : i32
    %c0_i32_1 = arith.constant 0 : i32
    return %c0_i32, %c0_i32_0 : i32, i32
  }
  func.func @transform_4(%arg0: i32) -> (i32, i32, i32) {
    %c0_i32 = arith.constant 0 : i32
    %c0_i32_0 = arith.constant 0 : i32
    %c0_i32_1 = arith.constant 0 : i32
    return %arg0, %c0_i32, %c0_i32_0 : i32, i32, i32
  }
}

module attributes {stable_mosaic.version = 11 : i64} {
  func.func @_attention_kernel(%arg0: i32, %arg1: memref<1x16x128xf32, #tpu.memory_space<vmem>>, %arg2: memref<128x384xbf16, #tpu.memory_space<vmem>>, %arg3: memref<128x128xbf16, #tpu.memory_space<vmem>>, %arg4: memref<1x128xf32, #tpu.memory_space<vmem>>, %arg5: memref<1x16x128xf32, #tpu.memory_space<vmem>>) attributes {dimension_semantics = [#tpu.dimension_semantics<parallel>], iteration_bounds = array<i64: 2>, scalar_prefetch = 0 : i64, scratch_operands = 0 : i64, tpu.core_type = #tpu.core_type<tc>, window_params = [{transform_indices = @transform_0, window_bounds = array<i64: 1, 16, 128>}, {pipeline_mode = #tpu.pipeline_mode<synchronous>, transform_indices = @transform_1, window_bounds = array<i64: 128, 384>}, {pipeline_mode = #tpu.pipeline_mode<synchronous>, transform_indices = @transform_2, window_bounds = array<i64: 128, 128>}, {pipeline_mode = #tpu.pipeline_mode<synchronous>, transform_indices = @transform_3, window_bounds = array<i64: 1, 128>}, {transform_indices = @transform_4, window_bounds = array<i64: 1, 16, 128>}]} {
    %c0 = arith.constant 0 : index
    %c0_0 = arith.constant 0 : index
    %c0_1 = arith.constant 0 : index
    %0 = vector.load %arg1[%c0, %c0_0, %c0_1] : memref<1x16x128xf32, #tpu.memory_space<vmem>>, vector<1x16x128xf32>
    %1 = vector.shape_cast %0 : vector<1x16x128xf32> to vector<16x128xf32>
    %2 = arith.truncf %1 : vector<16x128xf32> to vector<16x128xbf16>
    %c0_2 = arith.constant 0 : index
    %c0_3 = arith.constant 0 : index
    %3 = vector.load %arg2[%c0_2, %c0_3] : memref<128x384xbf16, #tpu.memory_space<vmem>>, vector<128x384xbf16>
    %cst = arith.constant dense<0.000000e+00> : vector<16x384xf32>
    %4 = tpu.matmul %2, %3, %cst {dimension_numbers = #tpu.dot_dimension_numbers<[1], [0], [0], [1], [0, 0, 1, 1], [], []>} : vector<16x128xbf16>, vector<128x384xbf16>, vector<16x384xf32> -> vector<16x384xf32>
    %5 = arith.truncf %4 : vector<16x384xf32> to vector<16x384xbf16>
    %6 = vector.extract_strided_slice %5 {offsets = [0, 0], sizes = [16, 128], strides = [1, 1]} : vector<16x384xbf16> to vector<16x128xbf16>
    %7 = vector.extract_strided_slice %6 {offsets = [0, 0], sizes = [16, 32], strides = [1, 1]} : vector<16x128xbf16> to vector<16x32xbf16>
    %8 = vector.extract_strided_slice %6 {offsets = [0, 32], sizes = [16, 32], strides = [1, 1]} : vector<16x128xbf16> to vector<16x32xbf16>
    %9 = vector.extract_strided_slice %6 {offsets = [0, 64], sizes = [16, 32], strides = [1, 1]} : vector<16x128xbf16> to vector<16x32xbf16>
    %10 = vector.extract_strided_slice %6 {offsets = [0, 96], sizes = [16, 32], strides = [1, 1]} : vector<16x128xbf16> to vector<16x32xbf16>
    %11 = vector.shape_cast %7 : vector<16x32xbf16> to vector<1x16x32xbf16>
    %12 = vector.shape_cast %8 : vector<16x32xbf16> to vector<1x16x32xbf16>
    %13 = vector.shape_cast %9 : vector<16x32xbf16> to vector<1x16x32xbf16>
    %14 = vector.shape_cast %10 : vector<16x32xbf16> to vector<1x16x32xbf16>
    %15 = tpu.concatenate %11, %12, %13, %14 in 0 : vector<1x16x32xbf16>, vector<1x16x32xbf16>, vector<1x16x32xbf16>, vector<1x16x32xbf16> -> vector<4x16x32xbf16>
    %16 = vector.extract_strided_slice %5 {offsets = [0, 128], sizes = [16, 128], strides = [1, 1]} : vector<16x384xbf16> to vector<16x128xbf16>
    %17 = vector.extract_strided_slice %16 {offsets = [0, 0], sizes = [16, 32], strides = [1, 1]} : vector<16x128xbf16> to vector<16x32xbf16>
    %18 = vector.extract_strided_slice %16 {offsets = [0, 32], sizes = [16, 32], strides = [1, 1]} : vector<16x128xbf16> to vector<16x32xbf16>
    %19 = vector.extract_strided_slice %16 {offsets = [0, 64], sizes = [16, 32], strides = [1, 1]} : vector<16x128xbf16> to vector<16x32xbf16>
    %20 = vector.extract_strided_slice %16 {offsets = [0, 96], sizes = [16, 32], strides = [1, 1]} : vector<16x128xbf16> to vector<16x32xbf16>
    %21 = vector.shape_cast %17 : vector<16x32xbf16> to vector<1x16x32xbf16>
    %22 = vector.shape_cast %18 : vector<16x32xbf16> to vector<1x16x32xbf16>
    %23 = vector.shape_cast %19 : vector<16x32xbf16> to vector<1x16x32xbf16>
    %24 = vector.shape_cast %20 : vector<16x32xbf16> to vector<1x16x32xbf16>
    %25 = tpu.concatenate %21, %22, %23, %24 in 0 : vector<1x16x32xbf16>, vector<1x16x32xbf16>, vector<1x16x32xbf16>, vector<1x16x32xbf16> -> vector<4x16x32xbf16>
    %26 = vector.extract_strided_slice %5 {offsets = [0, 256], sizes = [16, 128], strides = [1, 1]} : vector<16x384xbf16> to vector<16x128xbf16>
    %27 = vector.extract_strided_slice %26 {offsets = [0, 0], sizes = [16, 32], strides = [1, 1]} : vector<16x128xbf16> to vector<16x32xbf16>
    %28 = vector.extract_strided_slice %26 {offsets = [0, 32], sizes = [16, 32], strides = [1, 1]} : vector<16x128xbf16> to vector<16x32xbf16>
    %29 = vector.extract_strided_slice %26 {offsets = [0, 64], sizes = [16, 32], strides = [1, 1]} : vector<16x128xbf16> to vector<16x32xbf16>
    %30 = vector.extract_strided_slice %26 {offsets = [0, 96], sizes = [16, 32], strides = [1, 1]} : vector<16x128xbf16> to vector<16x32xbf16>
    %31 = vector.shape_cast %27 : vector<16x32xbf16> to vector<1x16x32xbf16>
    %32 = vector.shape_cast %28 : vector<16x32xbf16> to vector<1x16x32xbf16>
    %33 = vector.shape_cast %29 : vector<16x32xbf16> to vector<1x16x32xbf16>
    %34 = vector.shape_cast %30 : vector<16x32xbf16> to vector<1x16x32xbf16>
    %35 = tpu.concatenate %31, %32, %33, %34 in 0 : vector<1x16x32xbf16>, vector<1x16x32xbf16>, vector<1x16x32xbf16>, vector<1x16x32xbf16> -> vector<4x16x32xbf16>
    "tpu.trace_start"() <{level = 10 : i32, message = "bqd,bkd->bqk"}> : () -> ()
    %cst_4 = arith.constant dense<0.000000e+00> : vector<4x16x16xf32>
    %36 = tpu.matmul %15, %25, %cst_4 {dimension_numbers = #tpu.dot_dimension_numbers<[2], [2], [1], [1], [0, 0, 0, 1, 1, 1], [0], [0]>} : vector<4x16x32xbf16>, vector<4x16x32xbf16>, vector<4x16x16xf32> -> vector<4x16x16xf32>
    "tpu.trace_stop"() : () -> ()
    %cst_5 = arith.constant dense<0xFF800000> : vector<4x16xf32>
    %37 = vector.multi_reduction <maximumf>, %36, %cst_5 [2] : vector<4x16x16xf32> to vector<4x16xf32>
    %38 = vector.shape_cast %37 : vector<4x16xf32> to vector<4x16x1xf32>
    %39 = vector.broadcast %38 : vector<4x16x1xf32> to vector<4x16x16xf32>
    %40 = arith.subf %36, %39 : vector<4x16x16xf32>
    %41 = math.exp %40 : vector<4x16x16xf32>
    %cst_6 = arith.constant dense<0.000000e+00> : vector<4x16xf32>
    %42 = vector.multi_reduction <add>, %41, %cst_6 [2] : vector<4x16x16xf32> to vector<4x16xf32>
    %43 = vector.shape_cast %42 : vector<4x16xf32> to vector<4x16x1xf32>
    %44 = tpu.reciprocal %43 {approx = true} : vector<4x16x1xf32> -> vector<4x16x1xf32>
    %45 = vector.broadcast %44 : vector<4x16x1xf32> to vector<4x16x16xf32>
    %46 = arith.mulf %41, %45 : vector<4x16x16xf32>
    %47 = arith.truncf %46 : vector<4x16x16xf32> to vector<4x16x16xbf16>
    "tpu.trace_start"() <{level = 10 : i32, message = "bqk,bkd->bqd"}> : () -> ()
    %cst_7 = arith.constant dense<0.000000e+00> : vector<4x16x32xf32>
    %48 = tpu.matmul %47, %35, %cst_7 {dimension_numbers = #tpu.dot_dimension_numbers<[2], [1], [1], [2], [0, 0, 0, 1, 1, 2], [0], [0]>} : vector<4x16x16xbf16>, vector<4x16x32xbf16>, vector<4x16x32xf32> -> vector<4x16x32xf32>
    "tpu.trace_stop"() : () -> ()
    %49 = vector.extract_strided_slice %48 {offsets = [0, 0, 0], sizes = [1, 16, 32], strides = [1, 1, 1]} : vector<4x16x32xf32> to vector<1x16x32xf32>
    %50 = vector.shape_cast %49 : vector<1x16x32xf32> to vector<16x32xf32>
    %51 = vector.extract_strided_slice %48 {offsets = [1, 0, 0], sizes = [1, 16, 32], strides = [1, 1, 1]} : vector<4x16x32xf32> to vector<1x16x32xf32>
    %52 = vector.shape_cast %51 : vector<1x16x32xf32> to vector<16x32xf32>
    %53 = vector.extract_strided_slice %48 {offsets = [2, 0, 0], sizes = [1, 16, 32], strides = [1, 1, 1]} : vector<4x16x32xf32> to vector<1x16x32xf32>
    %54 = vector.shape_cast %53 : vector<1x16x32xf32> to vector<16x32xf32>
    %55 = vector.extract_strided_slice %48 {offsets = [3, 0, 0], sizes = [1, 16, 32], strides = [1, 1, 1]} : vector<4x16x32xf32> to vector<1x16x32xf32>
    %56 = vector.shape_cast %55 : vector<1x16x32xf32> to vector<16x32xf32>
    %57 = tpu.concatenate %50, %52, %54, %56 in 1 : vector<16x32xf32>, vector<16x32xf32>, vector<16x32xf32>, vector<16x32xf32> -> vector<16x128xf32>
    %58 = arith.truncf %57 : vector<16x128xf32> to vector<16x128xbf16>
    %c0_8 = arith.constant 0 : index
    %c0_9 = arith.constant 0 : index
    %59 = vector.load %arg3[%c0_8, %c0_9] : memref<128x128xbf16, #tpu.memory_space<vmem>>, vector<128x128xbf16>
    %cst_10 = arith.constant dense<0.000000e+00> : vector<16x128xf32>
    %60 = tpu.matmul %58, %59, %cst_10 {dimension_numbers = #tpu.dot_dimension_numbers<[1], [0], [0], [1], [0, 0, 1, 1], [], []>} : vector<16x128xbf16>, vector<128x128xbf16>, vector<16x128xf32> -> vector<16x128xf32>
    %c0_11 = arith.constant 0 : index
    %c0_12 = arith.constant 0 : index
    %61 = vector.load %arg4[%c0_11, %c0_12] : memref<1x128xf32, #tpu.memory_space<vmem>>, vector<1x128xf32>
    %62 = vector.broadcast %61 : vector<1x128xf32> to vector<16x128xf32>
    %63 = arith.addf %60, %62 : vector<16x128xf32>
    %64 = vector.shape_cast %63 : vector<16x128xf32> to vector<1x16x128xf32>
    %c0_13 = arith.constant 0 : index
    %c0_14 = arith.constant 0 : index
    %c0_15 = arith.constant 0 : index
    %65 = vector.load %arg5[%c0_13, %c0_14, %c0_15] : memref<1x16x128xf32, #tpu.memory_space<vmem>>, vector<1x16x128xf32>
    tpu.vector_store %arg5[%c0_13, %c0_14, %c0_15], %64 {strides = array<i32>} : memref<1x16x128xf32, #tpu.memory_space<vmem>>, vector<1x16x128xf32>,
    return
  }
  func.func @transform_0(%arg0: i32) -> (i32, i32, i32) {
    %c0_i32 = arith.constant 0 : i32
    %c0_i32_0 = arith.constant 0 : i32
    %c0_i32_1 = arith.constant 0 : i32
    return %arg0, %c0_i32, %c0_i32_0 : i32, i32, i32
  }
  func.func @transform_1(%arg0: i32) -> (i32, i32) {
    %c0_i32 = arith.constant 0 : i32
    %c0_i32_0 = arith.constant 0 : i32
    %c0_i32_1 = arith.constant 0 : i32
    return %c0_i32, %c0_i32_0 : i32, i32
  }
  func.func @transform_2(%arg0: i32) -> (i32, i32) {
    %c0_i32 = arith.constant 0 : i32
    %c0_i32_0 = arith.constant 0 : i32
    %c0_i32_1 = arith.constant 0 : i32
    return %c0_i32, %c0_i32_0 : i32, i32
  }
  func.func @transform_3(%arg0: i32) -> (i32, i32) {
    %c0_i32 = arith.constant 0 : i32
    %c0_i32_0 = arith.constant 0 : i32
    %c0_i32_1 = arith.constant 0 : i32
    return %c0_i32, %c0_i32_0 : i32, i32
  }
  func.func @transform_4(%arg0: i32) -> (i32, i32, i32) {
    %c0_i32 = arith.constant 0 : i32
    %c0_i32_0 = arith.constant 0 : i32
    %c0_i32_1 = arith.constant 0 : i32
    return %arg0, %c0_i32, %c0_i32_0 : i32, i32, i32
  }
}

</mosaic_0001>

<llo_original>
// kernel: tpu_custom_call.1
$region0: #{tpu_custom_call.1}
  #allocation0 [shape = 'u32[]', space=smem, size = 0x4, offset = 0x4, fixed_abs, tag = 'smem constant byte address 0x4 - core index']
  #allocation1 [shape = 'u32[144,128]{1,0:T(1,128)}', space=vmem, size = 0x12000, scoped, tag = 'internal scratch']
  %s0 = inlined_call_operand.hbm [shape: f32[2,16,128], index: 0, kind: input, shape index: {}]
  %s1 = inlined_call_operand.hbm [shape: bf16[128,384], index: 1, kind: input, shape index: {}]
  %s2 = inlined_call_operand.hbm [shape: bf16[128,128], index: 2, kind: input, shape index: {}]
  %s3 = inlined_call_operand.vmem [shape: f32[1,128], index: 3, kind: input, shape index: {}]
  %s4 = inlined_call_operand.hbm [shape: f32[2,16,128], index: 4, kind: output, shape index: {}]
  %s5 = sld [smem:[#allocation0]]
  $region61: #{tpu_custom_call.1} parent=0
    _
  %s7 = ssub.s32 1, %s5
  %s8 = scalar_select 0, %s7, %s5
  $region1: #{tpu_custom_call.1} parent=0
    #allocation2 [shape = 'u8[16384]{0}', space=vmem, size = 0x4000, scoped, tag = 'input window, operand 0']
    #allocation3 [shape = 's32[2]{0}', space=sflag, size = 0x8, scoped, tag = 'scoped memory for tpu_custom_call.1']
    #allocation4 [shape = 's32[2]{0}', space=sflag, size = 0x8, scoped, tag = 'scoped memory for tpu_custom_call.1']
    #allocation5 [shape = 'u8[98304]{0}', space=vmem, size = 0x18000, scoped, tag = 'input window, operand 1, single buffered']
    #allocation6 [shape = 's32[1]{0}', space=sflag, size = 0x4, scoped, tag = 'scoped memory for tpu_custom_call.1']
    #allocation7 [shape = 'u8[32768]{0}', space=vmem, size = 0x8000, scoped, tag = 'input window, operand 2, single buffered']
    #allocation8 [shape = 'u8[16384]{0}', space=vmem, size = 0x4000, scoped, tag = 'output window, operand 0']
    %9 = vsyncpa [#allocation3], 0
    %s10 = scalar_lea.sflag [#allocation3], 1
    %11 = vsyncpa %s10, 0
    %12 = vsyncpa [#allocation6], 0
    %13 = vsyncpa [#allocation4], 0
    %s14 = scalar_lea.sflag [#allocation4], 1
    %15 = vsyncpa %s14, 0
    loop: start=0, step=1, limit=4
    $region2: #{tpu_custom_call.1} parent=1 // loop_pre_header
      _
    $region3: #{tpu_custom_call.1} parent=1 // loop_header
      %s17 = sphi 0, %s21
      %p18 = scmp.ge.s32.totalorder %s17, 4
      %s27 = sphi 0, %s29
      %s30 = sphi 0, %s27
      %s31 = sphi 0, %s30
      %s47 = sphi 0, %s31
      %s51 = sphi 0, %s51
      %s53 = sphi 0, %s51
      %s54 = sphi 0, %s53
      %s68 = sphi 0, %s54
      %s72 = sphi 0, %s72
      %s74 = sphi 0, %s72
      %s75 = sphi 0, %s74
      %s89 = sphi 0, %s75
      %s93 = sphi 0, %s93
      %s95 = sphi 0, %s93
      %s96 = sphi 0, %s95
      %s110 = sphi 0, %s96
      %s116 = sphi 0, %s118
      %s119 = sphi 0, %s116
      %s120 = sphi 0, %s119
      %s136 = sphi 0, %s120
    $region4: #{tpu_custom_call.1} parent=1 // loop_header_branch
      %20 = sbr.rel (%p18) target = $region8
    $region5: #{tpu_custom_call.1} parent=1 // loop_body
      %s22 = ssub.s32 %s17, 1
      %s23 = ssub.s32 %s17, 2
      %s24 = sadd.s32 %s17, 1
      %s25 = ssub.s32 %s17, %s24
      %p26 = scmp.eq.s32.totalorder %s25, 0
      %s28 = sadd.s32 %s27, 1
      %s29 = scalar_select %p26, %s27, %s28
      %p32 = pneg %p26
      %p33 = scmp.eq.s32.totalorder %s17, 1
      %p34 = por %p32, %p33
      %p35 = scmp.ne.s32.totalorder %s27, %s30
      %p36 = scmp.eq.s32.totalorder %s17, 0
      %p37 = por %p35, %p36
      %p38 = scmp.ne.s32.totalorder %s27, %s30
      %p39 = scmp.eq.s32.totalorder %s22, 1
      %p40 = por %p38, %p39
      %p41 = scmp.ne.s32.totalorder %s30, %s31
      %p42 = scmp.eq.s32.totalorder %s22, 0
      %p43 = por %p41, %p42
      %p44 = scmp.ne.s32.totalorder %s30, %s31
      %p45 = scmp.eq.s32.totalorder %s23, 1
      %p46 = por %p44, %p45
      %p48 = scmp.ne.s32.totalorder %s31, %s47
      %p49 = scmp.eq.s32.totalorder %s23, 0
      %p50 = por %p48, %p49
      %s52 = sadd.s32 %s51, 1
      %p55 = scmp.eq.s32.totalorder %s17, 1
      %p56 = scmp.ne.s32.totalorder %s51, %s53
      %p57 = scmp.eq.s32.totalorder %s17, 0
      %p58 = por %p56, %p57
      %p59 = scmp.ne.s32.totalorder %s51, %s53
      %p60 = scmp.eq.s32.totalorder %s22, 1
      %p61 = por %p59, %p60
      %p62 = scmp.ne.s32.totalorder %s53, %s54
      %p63 = scmp.eq.s32.totalorder %s22, 0
      %p64 = por %p62, %p63
      %p65 = scmp.ne.s32.totalorder %s53, %s54
      %p66 = scmp.eq.s32.totalorder %s23, 1
      %p67 = por %p65, %p66
      %p69 = scmp.ne.s32.totalorder %s54, %s68
      %p70 = scmp.eq.s32.totalorder %s23, 0
      %p71 = por %p69, %p70
      %s73 = sadd.s32 %s72, 1
      %p76 = scmp.eq.s32.totalorder %s17, 1
      %p77 = scmp.ne.s32.totalorder %s72, %s74
      %p78 = scmp.eq.s32.totalorder %s17, 0
      %p79 = por %p77, %p78
      %p80 = scmp.ne.s32.totalorder %s72, %s74
      %p81 = scmp.eq.s32.totalorder %s22, 1
      %p82 = por %p80, %p81
      %p83 = scmp.ne.s32.totalorder %s74, %s75
      %p84 = scmp.eq.s32.totalorder %s22, 0
      %p85 = por %p83, %p84
      %p86 = scmp.ne.s32.totalorder %s74, %s75
      %p87 = scmp.eq.s32.totalorder %s23, 1
      %p88 = por %p86, %p87
      %p90 = scmp.ne.s32.totalorder %s75, %s89
      %p91 = scmp.eq.s32.totalorder %s23, 0
      %p92 = por %p90, %p91
      %s94 = sadd.s32 %s93, 1
      %p97 = scmp.eq.s32.totalorder %s17, 1
      %p98 = scmp.ne.s32.totalorder %s93, %s95
      %p99 = scmp.eq.s32.totalorder %s17, 0
      %p100 = por %p98, %p99
      %p101 = scmp.ne.s32.totalorder %s93, %s95
      %p102 = scmp.eq.s32.totalorder %s22, 1
      %p103 = por %p101, %p102
      %p104 = scmp.ne.s32.totalorder %s95, %s96
      %p105 = scmp.eq.s32.totalorder %s22, 0
      %p106 = por %p104, %p105
      %p107 = scmp.ne.s32.totalorder %s95, %s96
      %p108 = scmp.eq.s32.totalorder %s23, 1
      %p109 = por %p107, %p108
      %p111 = scmp.ne.s32.totalorder %s96, %s110
      %p112 = scmp.eq.s32.totalorder %s23, 0
      %p113 = por %p111, %p112
      %s114 = ssub.s32 %s17, %s24
      %p115 = scmp.eq.s32.totalorder %s114, 0
      %s117 = sadd.s32 %s116, 1
      %s118 = scalar_select %p115, %s116, %s117
      %p121 = pneg %p115
      %p122 = scmp.eq.s32.totalorder %s17, 1
      %p123 = por %p121, %p122
      %p124 = scmp.ne.s32.totalorder %s116, %s119
      %p125 = scmp.eq.s32.totalorder %s17, 0
      %p126 = por %p124, %p125
      %p127 = scmp.ne.s32.totalorder %s116, %s119
      %p128 = scmp.eq.s32.totalorder %s22, 1
      %p129 = por %p127, %p128
      %p130 = scmp.ne.s32.totalorder %s119, %s120
      %p131 = scmp.eq.s32.totalorder %s22, 0
      %p132 = por %p130, %p131
      %p133 = scmp.ne.s32.totalorder %s119, %s120
      %p134 = scmp.eq.s32.totalorder %s23, 1
      %p135 = por %p133, %p134
      %p137 = scmp.ne.s32.totalorder %s120, %s136
      %p138 = scmp.eq.s32.totalorder %s23, 0
      %p139 = por %p137, %p138
      %p140 = scmp.le.s32.totalorder 1, %s17
      %p141 = scmp.lt.s32.totalorder %s17, 3
      %p142 = pnand %p140, %p141
      %p143 = pneg %p142
      // Predicated region
      $region9: #{tpu_custom_call.1} parent=5 // pred_check
        _
      $region10: #{tpu_custom_call.1} parent=5 // pred_check_branch
        %145 = sbr.rel (%p142) target = $region12
      $region11: #{tpu_custom_call.1} parent=5 // pred_region
        %s146 = ssub.s32 %s17, 1
        // Predicated region
        $region13: #{tpu_custom_call.1} parent=11 // pred_check
          %p147 = pneg %p64
        $region14: #{tpu_custom_call.1} parent=11 // pred_check_branch
          %149 = sbr.rel (%p147) target = $region16
        $region15: #{tpu_custom_call.1} parent=11 // pred_region
          %s151 = ssub.s32 3072, 3072
          %152 = vsyncadd [#allocation6], %s151
          %s153 = sshll.u32 [#allocation5], 4
          %s154 = int_to_ptr.vmem [resolvable:$true] %s153
          %159 = dma.hbm_to_vmem [thread:$0]  %s1, 3072, %s154, [#allocation6], 192, 192, 12
        $region16: #{tpu_custom_call.1} parent=11 // pred_fallthru
          _
        // Predicated region
        $region17: #{tpu_custom_call.1} parent=11 // pred_check
          %p160 = pneg %p85
        $region18: #{tpu_custom_call.1} parent=11 // pred_check_branch
          %162 = sbr.rel (%p160) target = $region20
        $region19: #{tpu_custom_call.1} parent=11 // pred_region
          %s164 = ssub.s32 1024, 1024
          %165 = vsyncadd [#allocation6], %s164
          %s166 = sshll.u32 [#allocation7], 4
          %s167 = int_to_ptr.vmem [resolvable:$true] %s166
          %172 = dma.hbm_to_vmem [thread:$0]  %s2, 1024, %s167, [#allocation6], 64, 64, 4
        $region20: #{tpu_custom_call.1} parent=11 // pred_fallthru
          _
        // Predicated region
        $region21: #{tpu_custom_call.1} parent=11 // pred_check
          %p173 = pneg %p106
        $region22: #{tpu_custom_call.1} parent=11 // pred_check_branch
          %175 = sbr.rel (%p173) target = $region24
        $region23: #{tpu_custom_call.1} parent=11 // pred_region
          _
        $region24: #{tpu_custom_call.1} parent=11 // pred_fallthru
          _
      $region12: #{tpu_custom_call.1} parent=5 // pred_fallthru
        _
      %p176 = scmp.lt.s32.totalorder %s17, 2
      // Predicated region
      $region25: #{tpu_custom_call.1} parent=5 // pred_check
        %p177 = pneg %p176
      $region26: #{tpu_custom_call.1} parent=5 // pred_check_branch
        %179 = sbr.rel (%p177) target = $region28
      $region27: #{tpu_custom_call.1} parent=5 // pred_region
        // Predicated region
        $region29: #{tpu_custom_call.1} parent=27 // pred_check
          %p180 = pneg %p37
        $region30: #{tpu_custom_call.1} parent=27 // pred_check_branch
          %182 = sbr.rel (%p180) target = $region32
        $region31: #{tpu_custom_call.1} parent=27 // pred_region
          %s183 = sand.u32 %s27, 1
          %s184 = scalar_lea.sflag [#allocation3], %s183
          %s185 = sand.u32 %s27, 1
          %s186 = smul.addr %s185, 16
          %s187 = scalar_lea.vmem [#allocation2], %s186
          %s189 = ssub.s32 256, 256
          %190 = vsyncadd %s184, %s189
          %s191 = smul.addr %s17, 2
          %s192 = smul.addr %s191, 128
          %s193 = scalar_lea.hbm %s0, %s192
          %s194 = sshll.u32 %s187, 4
          %s195 = int_to_ptr.vmem [resolvable:$true] %s194
          %200 = dma.hbm_to_vmem [thread:$0]  %s193, 256, %s195, %s184, 128, 128, 8
        $region32: #{tpu_custom_call.1} parent=27 // pred_fallthru
          _
      $region28: #{tpu_custom_call.1} parent=5 // pred_fallthru
        _
      %p201 = scmp.le.s32.totalorder 1, %s17
      %p202 = scmp.lt.s32.totalorder %s17, 3
      %p203 = pnand %p201, %p202
      %p204 = pneg %p203
      // Predicated region
      $region33: #{tpu_custom_call.1} parent=5 // pred_check
        _
      $region34: #{tpu_custom_call.1} parent=5 // pred_check_branch
        %206 = sbr.rel (%p203) target = $region36
      $region35: #{tpu_custom_call.1} parent=5 // pred_region
        %s207 = ssub.s32 %s17, 1
        %s208 = sand.u32 %s30, 1
        %s209 = scalar_lea.sflag [#allocation3], %s208
        %s210 = sand.u32 %s30, 1
        %s211 = smul.addr %s210, 16
        %s212 = scalar_lea.vmem [#allocation2], %s211
        // Predicated region
        $region37: #{tpu_custom_call.1} parent=35 // pred_check
          %p213 = pneg %p43
        $region38: #{tpu_custom_call.1} parent=35 // pred_check_branch
          %215 = sbr.rel (%p213) target = $region40
        $region39: #{tpu_custom_call.1} parent=35 // pred_region
          %216 = dma.done %s209, 256
        $region40: #{tpu_custom_call.1} parent=35 // pred_fallthru
          _
        // Predicated region
        $region41: #{tpu_custom_call.1} parent=35 // pred_check
          %p217 = pneg %p64
        $region42: #{tpu_custom_call.1} parent=35 // pred_check_branch
          %219 = sbr.rel (%p217) target = $region44
        $region43: #{tpu_custom_call.1} parent=35 // pred_region
          %220 = dma.done [#allocation6], 3072
        $region44: #{tpu_custom_call.1} parent=35 // pred_fallthru
          _
        // Predicated region
        $region45: #{tpu_custom_call.1} parent=35 // pred_check
          %p221 = pneg %p85
        $region46: #{tpu_custom_call.1} parent=35 // pred_check_branch
          %223 = sbr.rel (%p221) target = $region48
        $region47: #{tpu_custom_call.1} parent=35 // pred_region
          %224 = dma.done [#allocation6], 1024
        $region48: #{tpu_custom_call.1} parent=35 // pred_fallthru
          _
        %s225 = sand.u32 %s30, 1
        %s226 = scalar_lea.sflag [#allocation3], %s225
        %s227 = sand.u32 %s30, 1
        %s228 = smul.addr %s227, 16
        %s229 = scalar_lea.vmem [#allocation2], %s228
        %p230 = pneg %p43
        %p231 = pneg %p40
        %p232 = pneg %p64
        %p233 = pneg %p61
        %p234 = pneg %p85
        %p235 = pneg %p82
        %p236 = pneg %p106
        %p237 = pneg %p103
        %p238 = pneg %p132
        %p239 = pneg %p129
        %s240 = sand.u32 %s119, 1
        %s241 = scalar_lea.sflag [#allocation4], %s240
        %s242 = sand.u32 %s119, 1
        %s243 = smul.addr %s242, 16
        %s244 = scalar_lea.vmem [#allocation8], %s243
        %v246 = vld [vmem:[%s212] sm:$0xff]
        %v247 = vld [vmem:[%s212 + $0x8] sm:$0xff]
        %v248 = vpack.c.bf16 %v247, %v246
        %v249 = vld [vmem:[#allocation5] sm:$0xff]
        %v250 = vld [vmem:[#allocation5 + $0x8] sm:$0xf]
        %v251 = vld [vmem:[#allocation5 + $0xc] sm:$0xff]
        %v252 = vld [vmem:[#allocation5 + $0x14] sm:$0xf]
        %v253 = vld [vmem:[#allocation5 + $0x18] sm:$0xff]
        %v254 = vld [vmem:[#allocation5 + $0x20] sm:$0xf]
        %v255 = vld [vmem:[#allocation5 + $0x24] sm:$0xff]
        %v256 = vld [vmem:[#allocation5 + $0x2c] sm:$0xf]
        %v257 = vld [vmem:[#allocation5 + $0x30] sm:$0xff]
        %v258 = vld [vmem:[#allocation5 + $0x38] sm:$0xf]
        %v259 = vld [vmem:[#allocation5 + $0x3c] sm:$0xff]
        %v260 = vld [vmem:[#allocation5 + $0x44] sm:$0xf]
        %v261 = vld [vmem:[#allocation5 + $0x48] sm:$0xff]
        %v262 = vld [vmem:[#allocation5 + $0x50] sm:$0xf]
        %v263 = vld [vmem:[#allocation5 + $0x54] sm:$0xff]
        %v264 = vld [vmem:[#allocation5 + $0x5c] sm:$0xf]
        %v265 = vld [vmem:[#allocation5 + $0x60] sm:$0xff]
        %v266 = vld [vmem:[#allocation5 + $0x68] sm:$0xf]
        %v267 = vld [vmem:[#allocation5 + $0x6c] sm:$0xff]
        %v268 = vld [vmem:[#allocation5 + $0x74] sm:$0xf]
        %v269 = vld [vmem:[#allocation5 + $0x78] sm:$0xff]
        %v270 = vld [vmem:[#allocation5 + $0x80] sm:$0xf]
        %v271 = vld [vmem:[#allocation5 + $0x84] sm:$0xff]
        %v272 = vld [vmem:[#allocation5 + $0x8c] sm:$0xf]
        %v273 = vld [vmem:[#allocation5 + $0x90] sm:$0xff]
        %v274 = vld [vmem:[#allocation5 + $0x98] sm:$0xf]
        %v275 = vld [vmem:[#allocation5 + $0x9c] sm:$0xff]
        %v276 = vld [vmem:[#allocation5 + $0xa4] sm:$0xf]
        %v277 = vld [vmem:[#allocation5 + $0xa8] sm:$0xff]
        %v278 = vld [vmem:[#allocation5 + $0xb0] sm:$0xf]
        %v279 = vld [vmem:[#allocation5 + $0xb4] sm:$0xff]
        %v280 = vld [vmem:[#allocation5 + $0xbc] sm:$0xf]
        %v313 = vunpack.c.l.b16 %v249
        %v314 = vunpack.c.h.b16 %v249
        %v315 = vunpack.c.l.b16 %v250
        %v316 = vunpack.c.l.b16 %v251
        %v317 = vunpack.c.h.b16 %v251
        %v318 = vunpack.c.l.b16 %v252
        %v319 = vunpack.c.l.b16 %v253
        %v320 = vunpack.c.h.b16 %v253
        %v321 = vunpack.c.l.b16 %v254
        %v322 = vunpack.c.l.b16 %v255
        %v323 = vunpack.c.h.b16 %v255
        %v324 = vunpack.c.l.b16 %v256
        %v325 = vunpack.c.l.b16 %v257
        %v326 = vunpack.c.h.b16 %v257
        %v327 = vunpack.c.l.b16 %v258
        %v328 = vunpack.c.l.b16 %v259
        %v329 = vunpack.c.h.b16 %v259
        %v330 = vunpack.c.l.b16 %v260
        %v331 = vunpack.c.l.b16 %v261
        %v332 = vunpack.c.h.b16 %v261
        %v333 = vunpack.c.l.b16 %v262
        %v334 = vunpack.c.l.b16 %v263
        %v335 = vunpack.c.h.b16 %v263
        %v336 = vunpack.c.l.b16 %v264
        %v337 = vunpack.c.l.b16 %v265
        %v338 = vunpack.c.h.b16 %v265
        %v339 = vunpack.c.l.b16 %v266
        %v340 = vunpack.c.l.b16 %v267
        %v341 = vunpack.c.h.b16 %v267
        %v342 = vunpack.c.l.b16 %v268
        %v343 = vunpack.c.l.b16 %v269
        %v344 = vunpack.c.h.b16 %v269
        %v345 = vunpack.c.l.b16 %v270
        %v346 = vunpack.c.l.b16 %v271
        %v347 = vunpack.c.h.b16 %v271
        %v348 = vunpack.c.l.b16 %v272
        %v349 = vunpack.c.l.b16 %v273
        %v350 = vunpack.c.h.b16 %v273
        %v351 = vunpack.c.l.b16 %v274
        %v352 = vunpack.c.l.b16 %v275
        %v353 = vunpack.c.h.b16 %v275
        %v354 = vunpack.c.l.b16 %v276
        %v355 = vunpack.c.l.b16 %v277
        %v356 = vunpack.c.h.b16 %v277
        %v357 = vunpack.c.l.b16 %v278
        %v358 = vunpack.c.l.b16 %v279
        %v359 = vunpack.c.h.b16 %v279
        %v360 = vunpack.c.l.b16 %v280
        %v361 = vpack.c.b16 %v316, %v313
        %v362 = vpack.c.b16 %v317, %v314
        %v363 = vpack.c.b16 %v318, %v315
        %v364 = vpack.c.b16 %v322, %v319
        %v365 = vpack.c.b16 %v323, %v320
        %v366 = vpack.c.b16 %v324, %v321
        %v367 = vpack.c.b16 %v328, %v325
        %v368 = vpack.c.b16 %v329, %v326
        %v369 = vpack.c.b16 %v330, %v327
        %v370 = vpack.c.b16 %v334, %v331
        %v371 = vpack.c.b16 %v335, %v332
        %v372 = vpack.c.b16 %v336, %v333
        %v373 = vpack.c.b16 %v340, %v337
        %v374 = vpack.c.b16 %v341, %v338
        %v375 = vpack.c.b16 %v342, %v339
        %v376 = vpack.c.b16 %v346, %v343
        %v377 = vpack.c.b16 %v347, %v344
        %v378 = vpack.c.b16 %v348, %v345
        %v379 = vpack.c.b16 %v352, %v349
        %v380 = vpack.c.b16 %v353, %v350
        %v381 = vpack.c.b16 %v354, %v351
        %v382 = vpack.c.b16 %v358, %v355
        %v383 = vpack.c.b16 %v359, %v356
        %v384 = vpack.c.b16 %v360, %v357
        %409 = vmatprep.subr.bf16.mxu0 %v362
        %410 = vmatpush1.bf16.msra.mxu0 %v361
        %411 = vmatprep.subr.bf16.mxu0 %v365
        %412 = vmatpush1.bf16.msra.mxu0 %v364
        %413 = vmatprep.subr.bf16.mxu0 %v368
        %414 = vmatpush1.bf16.msra.mxu0 %v367
        %415 = vmatprep.subr.bf16.mxu0 %v371
        %416 = vmatpush1.bf16.msra.mxu0 %v370
        %417 = vmatprep.subr.bf16.mxu0 %v374
        %418 = vmatpush1.bf16.msra.mxu0 %v373
        %419 = vmatprep.subr.bf16.mxu0 %v377
        %420 = vmatpush1.bf16.msra.mxu0 %v376
        %421 = vmatprep.subr.bf16.mxu0 %v380
        %422 = vmatpush1.bf16.msra.mxu0 %v379
        %423 = vmatprep.subr.bf16.mxu0 %v383
        %424 = vmatpush1.bf16.msra.mxu0 %v382
        %425 = vmatprep.subr.bf16.mxu0 0
        %426 = vmatpush1.bf16.msra.mxu0 0
        %427 = vmatprep.subr.bf16.mxu0 0
        %428 = vmatpush1.bf16.msra.mxu0 0
        %429 = vmatprep.subr.bf16.mxu0 0
        %430 = vmatpush1.bf16.msra.mxu0 0
        %431 = vmatprep.subr.bf16.mxu0 0
        %432 = vmatpush1.bf16.msra.mxu0 0
        %433 = vmatprep.subr.bf16.mxu0 0
        %434 = vmatpush1.bf16.msra.mxu0 0
        %435 = vmatprep.subr.bf16.mxu0 0
        %436 = vmatpush1.bf16.msra.mxu0 0
        %437 = vmatprep.subr.bf16.mxu0 0
        %438 = vmatpush1.bf16.msra.mxu0 0
        %439 = vmatprep.subr.bf16.mxu0 0
        %440 = vmatpush1.bf16.msra.mxu0 0
        %441 = vmatprep.mubr.bf16.mxu0 0
        %442 = vmatmul.mubr.bf16.gmra.mrb[0].mxu0 %v248
        %v443 = vpop.f32.mrb[0].mxu0
        %v444 = vadd.f32 0.0, %v443
        %v445 = vpop.f32.mrb[0].mxu0
        %v446 = vadd.f32 0.0, %v445
        %v447 = vpop.f32.mrb[0].mxu0
        %v448 = vadd.f32 0.0, %v447
        %v449 = vpop.f32.mrb[0].mxu0
        %v450 = vadd.f32 0.0, %v449
        %451 = vdwg.mxu0
        %452 = vmatprep.subr.bf16.mxu0 0
        %453 = vmatpush1.bf16.msra.mxu0 %v363
        %454 = vmatprep.subr.bf16.mxu0 0
        %455 = vmatpush1.bf16.msra.mxu0 %v366
        %456 = vmatprep.subr.bf16.mxu0 0
        %457 = vmatpush1.bf16.msra.mxu0 %v369
        %458 = vmatprep.subr.bf16.mxu0 0
        %459 = vmatpush1.bf16.msra.mxu0 %v372
        %460 = vmatprep.subr.bf16.mxu0 0
        %461 = vmatpush1.bf16.msra.mxu0 %v375
        %462 = vmatprep.subr.bf16.mxu0 0
        %463 = vmatpush1.bf16.msra.mxu0 %v378
        %464 = vmatprep.subr.bf16.mxu0 0
        %465 = vmatpush1.bf16.msra.mxu0 %v381
        %466 = vmatprep.subr.bf16.mxu0 0
        %467 = vmatpush1.bf16.msra.mxu0 %v384
        %468 = vmatprep.subr.bf16.mxu0 0
        %469 = vmatpush1.bf16.msra.mxu0 0
        %470 = vmatprep.subr.bf16.mxu0 0
        %471 = vmatpush1.bf16.msra.mxu0 0
        %472 = vmatprep.subr.bf16.mxu0 0
        %473 = vmatpush1.bf16.msra.mxu0 0
        %474 = vmatprep.subr.bf16.mxu0 0
        %475 = vmatpush1.bf16.msra.mxu0 0
        %476 = vmatprep.subr.bf16.mxu0 0
        %477 = vmatpush1.bf16.msra.mxu0 0
        %478 = vmatprep.subr.bf16.mxu0 0
        %479 = vmatpush1.bf16.msra.mxu0 0
        %480 = vmatprep.subr.bf16.mxu0 0
        %481 = vmatpush1.bf16.msra.mxu0 0
        %482 = vmatprep.subr.bf16.mxu0 0
        %483 = vmatpush1.bf16.msra.mxu0 0
        %484 = vmatprep.mubr.bf16.mxu0 0
        %485 = vmatmul.mubr.bf16.gmra.mrb[0].mxu0 %v248
        %v486 = vpop.f32.mrb[0].mxu0
        %v487 = vadd.f32 0.0, %v486
        %v488 = vpop.f32.mrb[0].mxu0
        %v489 = vpop.f32.mrb[0].mxu0
        %v490 = vadd.f32 0.0, %v489
        %v491 = vpop.f32.mrb[0].mxu0
        %492 = vdwg.mxu0
        %v493 = vpack.c.bf16 %v448, %v444
        %v494 = vpack.c.bf16 %v450, %v446
        %v495 = vpack.c.bf16 %v490, %v487
        %497 = vrot.lane.b32.xlu0 %v493, 96
        %v498 = vpop.permute.xlu0 %497
        %499 = vrot.lane.b32.xlu0 %v493, 64
        %v500 = vpop.permute.xlu0 %499
        %501 = vrot.lane.b32.xlu0 %v493, 32
        %v502 = vpop.permute.xlu0 %501
        %504 = vrot.lane.b32.xlu0 %v494, 96
        %v505 = vpop.permute.xlu0 %504
        %506 = vrot.lane.b32.xlu0 %v494, 64
        %v507 = vpop.permute.xlu0 %506
        %508 = vrot.lane.b32.xlu0 %v494, 32
        %v509 = vpop.permute.xlu0 %508
        %511 = vrot.lane.b32.xlu0 %v495, 96
        %v512 = vpop.permute.xlu0 %511
        %514 = vrot.lane.b32.xlu0 %v495, 64
        %v515 = vpop.permute.xlu0 %514
        %517 = vrot.lane.b32.xlu0 %v495, 32
        %v518 = vpop.permute.xlu0 %517
        %vm520 = vcmask 261120
        %v522 = vsel %vm520, %v493, 0
        %v525 = vsel %vm520, %v494, 0
        %527 = vmatprep.subr.bf16.mxu0 0
        %528 = vmatpush1.bf16.xpose.msra.mxu0 %v525
        %529 = vmatprep.subr.bf16.mxu0 0
        %530 = vmatpush1.bf16.xpose.msra.mxu0 0
        %531 = vmatprep.subr.bf16.mxu0 0
        %532 = vmatpush1.bf16.xpose.msra.mxu0 0
        %533 = vmatprep.subr.bf16.mxu0 0
        %534 = vmatpush1.bf16.xpose.msra.mxu0 0
        %535 = vmatprep.subr.bf16.mxu0 0
        %536 = vmatpush1.bf16.xpose.msra.mxu0 0
        %537 = vmatprep.subr.bf16.mxu0 0
        %538 = vmatpush1.bf16.xpose.msra.mxu0 0
        %539 = vmatprep.subr.bf16.mxu0 0
        %540 = vmatpush1.bf16.xpose.msra.mxu0 0
        %541 = vmatprep.subr.bf16.mxu0 0
        %542 = vmatpush1.bf16.xpose.msra.mxu0 0
        %543 = vmatprep.subr.bf16.mxu0 0
        %544 = vmatpush1.bf16.xpose.msra.mxu0 0
        %545 = vmatprep.subr.bf16.mxu0 0
        %546 = vmatpush1.bf16.xpose.msra.mxu0 0
        %547 = vmatprep.subr.bf16.mxu0 0
        %548 = vmatpush1.bf16.xpose.msra.mxu0 0
        %549 = vmatprep.subr.bf16.mxu0 0
        %550 = vmatpush1.bf16.xpose.msra.mxu0 0
        %551 = vmatprep.subr.bf16.mxu0 0
        %552 = vmatpush1.bf16.xpose.msra.mxu0 0
        %553 = vmatprep.subr.bf16.mxu0 0
        %554 = vmatpush1.bf16.xpose.msra.mxu0 0
        %555 = vmatprep.subr.bf16.mxu0 0
        %556 = vmatpush1.bf16.xpose.msra.mxu0 0
        %557 = vmatprep.subr.bf16.mxu0 0
        %558 = vmatpush1.bf16.xpose.msra.mxu0 0
        %559 = vmatprep.mubr.bf16.mxu0 0
        %560 = vmatmul.mubr.bf16.gmra.mrb[0].mxu0 %v522
        %v561 = vpop.f32.mrb[0].mxu0
        %v562 = vadd.f32 0.0, %v561
        %v563 = vpop.f32.mrb[0].mxu0
        %v564 = vpop.f32.mrb[0].mxu0
        %v565 = vadd.f32 0.0, %v564
        %v566 = vpop.f32.mrb[0].mxu0
        %567 = vdwg.mxu0
        %v569 = vsel %vm520, %v498, 0
        %v572 = vsel %vm520, %v505, 0
        %574 = vmatprep.subr.bf16.mxu0 0
        %575 = vmatpush1.bf16.xpose.msra.mxu0 %v572
        %576 = vmatprep.subr.bf16.mxu0 0
        %577 = vmatpush1.bf16.xpose.msra.mxu0 0
        %578 = vmatprep.subr.bf16.mxu0 0
        %579 = vmatpush1.bf16.xpose.msra.mxu0 0
        %580 = vmatprep.subr.bf16.mxu0 0
        %581 = vmatpush1.bf16.xpose.msra.mxu0 0
        %582 = vmatprep.subr.bf16.mxu0 0
        %583 = vmatpush1.bf16.xpose.msra.mxu0 0
        %584 = vmatprep.subr.bf16.mxu0 0
        %585 = vmatpush1.bf16.xpose.msra.mxu0 0
        %586 = vmatprep.subr.bf16.mxu0 0
        %587 = vmatpush1.bf16.xpose.msra.mxu0 0
        %588 = vmatprep.subr.bf16.mxu0 0
        %589 = vmatpush1.bf16.xpose.msra.mxu0 0
        %590 = vmatprep.subr.bf16.mxu0 0
        %591 = vmatpush1.bf16.xpose.msra.mxu0 0
        %592 = vmatprep.subr.bf16.mxu0 0
        %593 = vmatpush1.bf16.xpose.msra.mxu0 0
        %594 = vmatprep.subr.bf16.mxu0 0
        %595 = vmatpush1.bf16.xpose.msra.mxu0 0
        %596 = vmatprep.subr.bf16.mxu0 0
        %597 = vmatpush1.bf16.xpose.msra.mxu0 0
        %598 = vmatprep.subr.bf16.mxu0 0
        %599 = vmatpush1.bf16.xpose.msra.mxu0 0
        %600 = vmatprep.subr.bf16.mxu0 0
        %601 = vmatpush1.bf16.xpose.msra.mxu0 0
        %602 = vmatprep.subr.bf16.mxu0 0
        %603 = vmatpush1.bf16.xpose.msra.mxu0 0
        %604 = vmatprep.subr.bf16.mxu0 0
        %605 = vmatpush1.bf16.xpose.msra.mxu0 0
        %606 = vmatprep.mubr.bf16.mxu0 0
        %607 = vmatmul.mubr.bf16.gmra.mrb[0].mxu0 %v569
        %v608 = vpop.f32.mrb[0].mxu0
        %v609 = vadd.f32 0.0, %v608
        %v610 = vpop.f32.mrb[0].mxu0
        %v611 = vpop.f32.mrb[0].mxu0
        %v612 = vadd.f32 0.0, %v611
        %v613 = vpop.f32.mrb[0].mxu0
        %614 = vdwg.mxu0
        %v616 = vsel %vm520, %v500, 0
        %v619 = vsel %vm520, %v507, 0
        %621 = vmatprep.subr.bf16.mxu0 0
        %622 = vmatpush1.bf16.xpose.msra.mxu0 %v619
        %623 = vmatprep.subr.bf16.mxu0 0
        %624 = vmatpush1.bf16.xpose.msra.mxu0 0
        %625 = vmatprep.subr.bf16.mxu0 0
        %626 = vmatpush1.bf16.xpose.msra.mxu0 0
        %627 = vmatprep.subr.bf16.mxu0 0
        %628 = vmatpush1.bf16.xpose.msra.mxu0 0
        %629 = vmatprep.subr.bf16.mxu0 0
        %630 = vmatpush1.bf16.xpose.msra.mxu0 0
        %631 = vmatprep.subr.bf16.mxu0 0
        %632 = vmatpush1.bf16.xpose.msra.mxu0 0
        %633 = vmatprep.subr.bf16.mxu0 0
        %634 = vmatpush1.bf16.xpose.msra.mxu0 0
        %635 = vmatprep.subr.bf16.mxu0 0
        %636 = vmatpush1.bf16.xpose.msra.mxu0 0
        %637 = vmatprep.subr.bf16.mxu0 0
        %638 = vmatpush1.bf16.xpose.msra.mxu0 0
        %639 = vmatprep.subr.bf16.mxu0 0
        %640 = vmatpush1.bf16.xpose.msra.mxu0 0
        %641 = vmatprep.subr.bf16.mxu0 0
        %642 = vmatpush1.bf16.xpose.msra.mxu0 0
        %643 = vmatprep.subr.bf16.mxu0 0
        %644 = vmatpush1.bf16.xpose.msra.mxu0 0
        %645 = vmatprep.subr.bf16.mxu0 0
        %646 = vmatpush1.bf16.xpose.msra.mxu0 0
        %647 = vmatprep.subr.bf16.mxu0 0
        %648 = vmatpush1.bf16.xpose.msra.mxu0 0
        %649 = vmatprep.subr.bf16.mxu0 0
        %650 = vmatpush1.bf16.xpose.msra.mxu0 0
        %651 = vmatprep.subr.bf16.mxu0 0
        %652 = vmatpush1.bf16.xpose.msra.mxu0 0
        %653 = vmatprep.mubr.bf16.mxu0 0
        %654 = vmatmul.mubr.bf16.gmra.mrb[0].mxu0 %v616
        %v655 = vpop.f32.mrb[0].mxu0
        %v656 = vadd.f32 0.0, %v655
        %v657 = vpop.f32.mrb[0].mxu0
        %v658 = vpop.f32.mrb[0].mxu0
        %v659 = vadd.f32 0.0, %v658
        %v660 = vpop.f32.mrb[0].mxu0
        %661 = vdwg.mxu0
        %v663 = vsel %vm520, %v502, 0
        %v666 = vsel %vm520, %v509, 0
        %668 = vmatprep.subr.bf16.mxu0 0
        %669 = vmatpush1.bf16.xpose.msra.mxu0 %v666
        %670 = vmatprep.subr.bf16.mxu0 0
        %671 = vmatpush1.bf16.xpose.msra.mxu0 0
        %672 = vmatprep.subr.bf16.mxu0 0
        %673 = vmatpush1.bf16.xpose.msra.mxu0 0
        %674 = vmatprep.subr.bf16.mxu0 0
        %675 = vmatpush1.bf16.xpose.msra.mxu0 0
        %676 = vmatprep.subr.bf16.mxu0 0
        %677 = vmatpush1.bf16.xpose.msra.mxu0 0
        %678 = vmatprep.subr.bf16.mxu0 0
        %679 = vmatpush1.bf16.xpose.msra.mxu0 0
        %680 = vmatprep.subr.bf16.mxu0 0
        %681 = vmatpush1.bf16.xpose.msra.mxu0 0
        %682 = vmatprep.subr.bf16.mxu0 0
        %683 = vmatpush1.bf16.xpose.msra.mxu0 0
        %684 = vmatprep.subr.bf16.mxu0 0
        %685 = vmatpush1.bf16.xpose.msra.mxu0 0
        %686 = vmatprep.subr.bf16.mxu0 0
        %687 = vmatpush1.bf16.xpose.msra.mxu0 0
        %688 = vmatprep.subr.bf16.mxu0 0
        %689 = vmatpush1.bf16.xpose.msra.mxu0 0
        %690 = vmatprep.subr.bf16.mxu0 0
        %691 = vmatpush1.bf16.xpose.msra.mxu0 0
        %692 = vmatprep.subr.bf16.mxu0 0
        %693 = vmatpush1.bf16.xpose.msra.mxu0 0
        %694 = vmatprep.subr.bf16.mxu0 0
        %695 = vmatpush1.bf16.xpose.msra.mxu0 0
        %696 = vmatprep.subr.bf16.mxu0 0
        %697 = vmatpush1.bf16.xpose.msra.mxu0 0
        %698 = vmatprep.subr.bf16.mxu0 0
        %699 = vmatpush1.bf16.xpose.msra.mxu0 0
        %700 = vmatprep.mubr.bf16.mxu0 0
        %701 = vmatmul.mubr.bf16.gmra.mrb[0].mxu0 %v663
        %v702 = vpop.f32.mrb[0].mxu0
        %v703 = vadd.f32 0.0, %v702
        %v704 = vpop.f32.mrb[0].mxu0
        %v705 = vpop.f32.mrb[0].mxu0
        %v706 = vadd.f32 0.0, %v705
        %v707 = vpop.f32.mrb[0].mxu0
        %708 = vdwg.mxu0
        %vm709 = vcmask 130048
        %v710 = vsel %vm709, %v562, -inf
        %711 = vmax.xlane.f32.xlu0 %v710
        %v712 = vpop.xlane.xlu0 %711
        %v713 = vsel %vm709, %v565, -inf
        %714 = vmax.xlane.f32.xlu0 %v713
        %v715 = vpop.xlane.xlu0 %714
        %v716 = vsel %vm709, %v609, -inf
        %717 = vmax.xlane.f32.xlu0 %v716
        %v718 = vpop.xlane.xlu0 %717
        %v719 = vsel %vm709, %v612, -inf
        %720 = vmax.xlane.f32.xlu0 %v719
        %v721 = vpop.xlane.xlu0 %720
        %v722 = vsel %vm709, %v656, -inf
        %723 = vmax.xlane.f32.xlu0 %v722
        %v724 = vpop.xlane.xlu0 %723
        %v725 = vsel %vm709, %v659, -inf
        %726 = vmax.xlane.f32.xlu0 %v725
        %v727 = vpop.xlane.xlu0 %726
        %v728 = vsel %vm709, %v703, -inf
        %729 = vmax.xlane.f32.xlu0 %v728
        %v730 = vpop.xlane.xlu0 %729
        %v731 = vsel %vm709, %v706, -inf
        %732 = vmax.xlane.f32.xlu0 %v731
        %v733 = vpop.xlane.xlu0 %732
        %v734 = vsub.f32 %v562, %v712
        %v735 = vsub.f32 %v565, %v715
        %v736 = vsub.f32 %v609, %v718
        %v737 = vsub.f32 %v612, %v721
        %v738 = vsub.f32 %v656, %v724
        %v739 = vsub.f32 %v659, %v727
        %v740 = vsub.f32 %v703, %v730
        %v741 = vsub.f32 %v706, %v733
        %v742 = vmul.f32 %v734, 1.442695
        %v743 = vpow.pop %v742
        %v744 = vmul.f32 %v735, 1.442695
        %v745 = vpow.pop %v744
        %v746 = vmul.f32 %v736, 1.442695
        %v747 = vpow.pop %v746
        %v748 = vmul.f32 %v737, 1.442695
        %v749 = vpow.pop %v748
        %v750 = vmul.f32 %v738, 1.442695
        %v751 = vpow.pop %v750
        %v752 = vmul.f32 %v739, 1.442695
        %v753 = vpow.pop %v752
        %v754 = vmul.f32 %v740, 1.442695
        %v755 = vpow.pop %v754
        %v756 = vmul.f32 %v741, 1.442695
        %v757 = vpow.pop %v756
        %v758 = vsel %vm709, %v743, 0.0
        %759 = vadd.xlane.f32.xlu0 %v758
        %v760 = vpop.xlane.xlu0 %759
        %v761 = vsel %vm709, %v745, 0.0
        %762 = vadd.xlane.f32.xlu0 %v761
        %v763 = vpop.xlane.xlu0 %762
        %v764 = vsel %vm709, %v747, 0.0
        %765 = vadd.xlane.f32.xlu0 %v764
        %v766 = vpop.xlane.xlu0 %765
        %v767 = vsel %vm709, %v749, 0.0
        %768 = vadd.xlane.f32.xlu0 %v767
        %v769 = vpop.xlane.xlu0 %768
        %v770 = vsel %vm709, %v751, 0.0
        %771 = vadd.xlane.f32.xlu0 %v770
        %v772 = vpop.xlane.xlu0 %771
        %v773 = vsel %vm709, %v753, 0.0
        %774 = vadd.xlane.f32.xlu0 %v773
        %v775 = vpop.xlane.xlu0 %774
        %v776 = vsel %vm709, %v755, 0.0
        %777 = vadd.xlane.f32.xlu0 %v776
        %v778 = vpop.xlane.xlu0 %777
        %v779 = vsel %vm709, %v757, 0.0
        %780 = vadd.xlane.f32.xlu0 %v779
        %v781 = vpop.xlane.xlu0 %780
        %v782 = vrcp.pop %v760
        %v783 = vrcp.pop %v763
        %v784 = vrcp.pop %v766
        %v785 = vrcp.pop %v769
        %v786 = vrcp.pop %v772
        %v787 = vrcp.pop %v775
        %v788 = vrcp.pop %v778
        %v789 = vrcp.pop %v781
        %v790 = vmul.f32 %v743, %v782
        %v791 = vmul.f32 %v745, %v783
        %v792 = vmul.f32 %v747, %v784
        %v793 = vmul.f32 %v749, %v785
        %v794 = vmul.f32 %v751, %v786
        %v795 = vmul.f32 %v753, %v787
        %v796 = vmul.f32 %v755, %v788
        %v797 = vmul.f32 %v757, %v789
        %v798 = vpack.c.bf16 %v791, %v790
        %v799 = vpack.c.bf16 %v793, %v792
        %v800 = vpack.c.bf16 %v795, %v794
        %v801 = vpack.c.bf16 %v797, %v796
        %v803 = vsel %vm709, %v798, 0
        %805 = vmatprep.subr.bf16.mxu0 0
        %806 = vmatpush1.bf16.msra.mxu0 %v495
        %807 = vmatprep.subr.bf16.mxu0 0
        %808 = vmatpush1.bf16.msra.mxu0 0
        %809 = vmatprep.subr.bf16.mxu0 0
        %810 = vmatpush1.bf16.msra.mxu0 0
        %811 = vmatprep.subr.bf16.mxu0 0
        %812 = vmatpush1.bf16.msra.mxu0 0
        %813 = vmatprep.subr.bf16.mxu0 0
        %814 = vmatpush1.bf16.msra.mxu0 0
        %815 = vmatprep.subr.bf16.mxu0 0
        %816 = vmatpush1.bf16.msra.mxu0 0
        %817 = vmatprep.subr.bf16.mxu0 0
        %818 = vmatpush1.bf16.msra.mxu0 0
        %819 = vmatprep.subr.bf16.mxu0 0
        %820 = vmatpush1.bf16.msra.mxu0 0
        %821 = vmatprep.subr.bf16.mxu0 0
        %822 = vmatpush1.bf16.msra.mxu0 0
        %823 = vmatprep.subr.bf16.mxu0 0
        %824 = vmatpush1.bf16.msra.mxu0 0
        %825 = vmatprep.subr.bf16.mxu0 0
        %826 = vmatpush1.bf16.msra.mxu0 0
        %827 = vmatprep.subr.bf16.mxu0 0
        %828 = vmatpush1.bf16.msra.mxu0 0
        %829 = vmatprep.subr.bf16.mxu0 0
        %830 = vmatpush1.bf16.msra.mxu0 0
        %831 = vmatprep.subr.bf16.mxu0 0
        %832 = vmatpush1.bf16.msra.mxu0 0
        %833 = vmatprep.subr.bf16.mxu0 0
        %834 = vmatpush1.bf16.msra.mxu0 0
        %835 = vmatprep.subr.bf16.mxu0 0
        %836 = vmatpush1.bf16.msra.mxu0 0
        %837 = vmatprep.mubr.bf16.mxu0 0
        %838 = vmatmul.mubr.bf16.gmra.mrb[0].mxu0 %v803
        %v839 = vpop.f32.mrb[0].mxu0
        %v840 = vadd.f32 0.0, %v839
        %v841 = vpop.f32.mrb[0].mxu0
        %v842 = vpop.f32.mrb[0].mxu0
        %v843 = vadd.f32 0.0, %v842
        %v844 = vpop.f32.mrb[0].mxu0
        %845 = vdwg.mxu0
        %v847 = vsel %vm709, %v799, 0
        %849 = vmatprep.subr.bf16.mxu0 0
        %850 = vmatpush1.bf16.msra.mxu0 %v512
        %851 = vmatprep.subr.bf16.mxu0 0
        %852 = vmatpush1.bf16.msra.mxu0 0
        %853 = vmatprep.subr.bf16.mxu0 0
        %854 = vmatpush1.bf16.msra.mxu0 0
        %855 = vmatprep.subr.bf16.mxu0 0
        %856 = vmatpush1.bf16.msra.mxu0 0
        %857 = vmatprep.subr.bf16.mxu0 0
        %858 = vmatpush1.bf16.msra.mxu0 0
        %859 = vmatprep.subr.bf16.mxu0 0
        %860 = vmatpush1.bf16.msra.mxu0 0
        %861 = vmatprep.subr.bf16.mxu0 0
        %862 = vmatpush1.bf16.msra.mxu0 0
        %863 = vmatprep.subr.bf16.mxu0 0
        %864 = vmatpush1.bf16.msra.mxu0 0
        %865 = vmatprep.subr.bf16.mxu0 0
        %866 = vmatpush1.bf16.msra.mxu0 0
        %867 = vmatprep.subr.bf16.mxu0 0
        %868 = vmatpush1.bf16.msra.mxu0 0
        %869 = vmatprep.subr.bf16.mxu0 0
        %870 = vmatpush1.bf16.msra.mxu0 0
        %871 = vmatprep.subr.bf16.mxu0 0
        %872 = vmatpush1.bf16.msra.mxu0 0
        %873 = vmatprep.subr.bf16.mxu0 0
        %874 = vmatpush1.bf16.msra.mxu0 0
        %875 = vmatprep.subr.bf16.mxu0 0
        %876 = vmatpush1.bf16.msra.mxu0 0
        %877 = vmatprep.subr.bf16.mxu0 0
        %878 = vmatpush1.bf16.msra.mxu0 0
        %879 = vmatprep.subr.bf16.mxu0 0
        %880 = vmatpush1.bf16.msra.mxu0 0
        %881 = vmatprep.mubr.bf16.mxu0 0
        %882 = vmatmul.mubr.bf16.gmra.mrb[0].mxu0 %v847
        %v883 = vpop.f32.mrb[0].mxu0
        %v884 = vadd.f32 0.0, %v883
        %v885 = vpop.f32.mrb[0].mxu0
        %v886 = vpop.f32.mrb[0].mxu0
        %v887 = vadd.f32 0.0, %v886
        %v888 = vpop.f32.mrb[0].mxu0
        %889 = vdwg.mxu0
        %v891 = vsel %vm709, %v800, 0
        %893 = vmatprep.subr.bf16.mxu0 0
        %894 = vmatpush1.bf16.msra.mxu0 %v515
        %895 = vmatprep.subr.bf16.mxu0 0
        %896 = vmatpush1.bf16.msra.mxu0 0
        %897 = vmatprep.subr.bf16.mxu0 0
        %898 = vmatpush1.bf16.msra.mxu0 0
        %899 = vmatprep.subr.bf16.mxu0 0
        %900 = vmatpush1.bf16.msra.mxu0 0
        %901 = vmatprep.subr.bf16.mxu0 0
        %902 = vmatpush1.bf16.msra.mxu0 0
        %903 = vmatprep.subr.bf16.mxu0 0
        %904 = vmatpush1.bf16.msra.mxu0 0
        %905 = vmatprep.subr.bf16.mxu0 0
        %906 = vmatpush1.bf16.msra.mxu0 0
        %907 = vmatprep.subr.bf16.mxu0 0
        %908 = vmatpush1.bf16.msra.mxu0 0
        %909 = vmatprep.subr.bf16.mxu0 0
        %910 = vmatpush1.bf16.msra.mxu0 0
        %911 = vmatprep.subr.bf16.mxu0 0
        %912 = vmatpush1.bf16.msra.mxu0 0
        %913 = vmatprep.subr.bf16.mxu0 0
        %914 = vmatpush1.bf16.msra.mxu0 0
        %915 = vmatprep.subr.bf16.mxu0 0
        %916 = vmatpush1.bf16.msra.mxu0 0
        %917 = vmatprep.subr.bf16.mxu0 0
        %918 = vmatpush1.bf16.msra.mxu0 0
        %919 = vmatprep.subr.bf16.mxu0 0
        %920 = vmatpush1.bf16.msra.mxu0 0
        %921 = vmatprep.subr.bf16.mxu0 0
        %922 = vmatpush1.bf16.msra.mxu0 0
        %923 = vmatprep.subr.bf16.mxu0 0
        %924 = vmatpush1.bf16.msra.mxu0 0
        %925 = vmatprep.mubr.bf16.mxu0 0
        %926 = vmatmul.mubr.bf16.gmra.mrb[0].mxu0 %v891
        %v927 = vpop.f32.mrb[0].mxu0
        %v928 = vadd.f32 0.0, %v927
        %v929 = vpop.f32.mrb[0].mxu0
        %v930 = vpop.f32.mrb[0].mxu0
        %v931 = vadd.f32 0.0, %v930
        %v932 = vpop.f32.mrb[0].mxu0
        %933 = vdwg.mxu0
        %v935 = vsel %vm709, %v801, 0
        %937 = vmatprep.subr.bf16.mxu0 0
        %938 = vmatpush1.bf16.msra.mxu0 %v518
        %939 = vmatprep.subr.bf16.mxu0 0
        %940 = vmatpush1.bf16.msra.mxu0 0
        %941 = vmatprep.subr.bf16.mxu0 0
        %942 = vmatpush1.bf16.msra.mxu0 0
        %943 = vmatprep.subr.bf16.mxu0 0
        %944 = vmatpush1.bf16.msra.mxu0 0
        %945 = vmatprep.subr.bf16.mxu0 0
        %946 = vmatpush1.bf16.msra.mxu0 0
        %947 = vmatprep.subr.bf16.mxu0 0
        %948 = vmatpush1.bf16.msra.mxu0 0
        %949 = vmatprep.subr.bf16.mxu0 0
        %950 = vmatpush1.bf16.msra.mxu0 0
        %951 = vmatprep.subr.bf16.mxu0 0
        %952 = vmatpush1.bf16.msra.mxu0 0
        %953 = vmatprep.subr.bf16.mxu0 0
        %954 = vmatpush1.bf16.msra.mxu0 0
        %955 = vmatprep.subr.bf16.mxu0 0
        %956 = vmatpush1.bf16.msra.mxu0 0
        %957 = vmatprep.subr.bf16.mxu0 0
        %958 = vmatpush1.bf16.msra.mxu0 0
        %959 = vmatprep.subr.bf16.mxu0 0
        %960 = vmatpush1.bf16.msra.mxu0 0
        %961 = vmatprep.subr.bf16.mxu0 0
        %962 = vmatpush1.bf16.msra.mxu0 0
        %963 = vmatprep.subr.bf16.mxu0 0
        %964 = vmatpush1.bf16.msra.mxu0 0
        %965 = vmatprep.subr.bf16.mxu0 0
        %966 = vmatpush1.bf16.msra.mxu0 0
        %967 = vmatprep.subr.bf16.mxu0 0
        %968 = vmatpush1.bf16.msra.mxu0 0
        %969 = vmatprep.mubr.bf16.mxu0 0
        %970 = vmatmul.mubr.bf16.gmra.mrb[0].mxu0 %v935
        %v971 = vpop.f32.mrb[0].mxu0
        %v972 = vadd.f32 0.0, %v971
        %v973 = vpop.f32.mrb[0].mxu0
        %v974 = vpop.f32.mrb[0].mxu0
        %v975 = vadd.f32 0.0, %v974
        %v976 = vpop.f32.mrb[0].mxu0
        %977 = vdwg.mxu0
        %980 = vrot.lane.b32.xlu0 %v884, 32
        %v981 = vpop.permute.xlu0 %980
        %982 = vrot.lane.b32.xlu0 %v887, 32
        %v983 = vpop.permute.xlu0 %982
        %988 = vrot.lane.b32.xlu0 %v928, 64
        %v989 = vpop.permute.xlu0 %988
        %990 = vrot.lane.b32.xlu0 %v931, 64
        %v991 = vpop.permute.xlu0 %990
        %996 = vrot.lane.b32.xlu0 %v972, 96
        %v997 = vpop.permute.xlu0 %996
        %998 = vrot.lane.b32.xlu0 %v975, 96
        %v999 = vpop.permute.xlu0 %998
        %v1002 = vsel %vm520, %v840, %v981
        %v1003 = vsel %vm520, %v843, %v983
        %vm1004 = vcmask 523264
        %v1005 = vsel %vm1004, %v1002, %v989
        %v1006 = vsel %vm1004, %v1003, %v991
        %vm1007 = vcmask 785408
        %v1008 = vsel %vm1007, %v1005, %v997
        %v1009 = vsel %vm1007, %v1006, %v999
        %v1010 = vpack.c.bf16 %v1009, %v1008
        %v1011 = vld [vmem:[#allocation7] sm:$0xf]
        %v1012 = vld [vmem:[#allocation7 + $0x4] sm:$0xf]
        %v1013 = vld [vmem:[#allocation7 + $0x8] sm:$0xf]
        %v1014 = vld [vmem:[#allocation7 + $0xc] sm:$0xf]
        %v1015 = vld [vmem:[#allocation7 + $0x10] sm:$0xf]
        %v1016 = vld [vmem:[#allocation7 + $0x14] sm:$0xf]
        %v1017 = vld [vmem:[#allocation7 + $0x18] sm:$0xf]
        %v1018 = vld [vmem:[#allocation7 + $0x1c] sm:$0xf]
        %v1019 = vld [vmem:[#allocation7 + $0x20] sm:$0xf]
        %v1020 = vld [vmem:[#allocation7 + $0x24] sm:$0xf]
        %v1021 = vld [vmem:[#allocation7 + $0x28] sm:$0xf]
        %v1022 = vld [vmem:[#allocation7 + $0x2c] sm:$0xf]
        %v1023 = vld [vmem:[#allocation7 + $0x30] sm:$0xf]
        %v1024 = vld [vmem:[#allocation7 + $0x34] sm:$0xf]
        %v1025 = vld [vmem:[#allocation7 + $0x38] sm:$0xf]
        %v1026 = vld [vmem:[#allocation7 + $0x3c] sm:$0xf]
        %v1027 = vld [vmem:[%s3] sm:$0x1]
        %v1029 = vlaneseq
        %v1030 = vshrl.u32 %v1029, 7
        %v1031 = vsub.s32 0, %v1030
        %v1032 = vrot.slane %v1027, %v1031
        %v1050 = vunpack.c.l.b16 %v1011
        %v1051 = vunpack.c.l.b16 %v1012
        %v1052 = vunpack.c.l.b16 %v1013
        %v1053 = vunpack.c.l.b16 %v1014
        %v1054 = vunpack.c.l.b16 %v1015
        %v1055 = vunpack.c.l.b16 %v1016
        %v1056 = vunpack.c.l.b16 %v1017
        %v1057 = vunpack.c.l.b16 %v1018
        %v1058 = vunpack.c.l.b16 %v1019
        %v1059 = vunpack.c.l.b16 %v1020
        %v1060 = vunpack.c.l.b16 %v1021
        %v1061 = vunpack.c.l.b16 %v1022
        %v1062 = vunpack.c.l.b16 %v1023
        %v1063 = vunpack.c.l.b16 %v1024
        %v1064 = vunpack.c.l.b16 %v1025
        %v1065 = vunpack.c.l.b16 %v1026
        %v1066 = vpack.c.b16 %v1051, %v1050
        %v1067 = vpack.c.b16 %v1053, %v1052
        %v1068 = vpack.c.b16 %v1055, %v1054
        %v1069 = vpack.c.b16 %v1057, %v1056
        %v1070 = vpack.c.b16 %v1059, %v1058
        %v1071 = vpack.c.b16 %v1061, %v1060
        %v1072 = vpack.c.b16 %v1063, %v1062
        %v1073 = vpack.c.b16 %v1065, %v1064
        %1082 = vmatprep.subr.bf16.mxu0 0
        %1083 = vmatpush1.bf16.msra.mxu0 %v1066
        %1084 = vmatprep.subr.bf16.mxu0 0
        %1085 = vmatpush1.bf16.msra.mxu0 %v1067
        %1086 = vmatprep.subr.bf16.mxu0 0
        %1087 = vmatpush1.bf16.msra.mxu0 %v1068
        %1088 = vmatprep.subr.bf16.mxu0 0
        %1089 = vmatpush1.bf16.msra.mxu0 %v1069
        %1090 = vmatprep.subr.bf16.mxu0 0
        %1091 = vmatpush1.bf16.msra.mxu0 %v1070
        %1092 = vmatprep.subr.bf16.mxu0 0
        %1093 = vmatpush1.bf16.msra.mxu0 %v1071
        %1094 = vmatprep.subr.bf16.mxu0 0
        %1095 = vmatpush1.bf16.msra.mxu0 %v1072
        %1096 = vmatprep.subr.bf16.mxu0 0
        %1097 = vmatpush1.bf16.msra.mxu0 %v1073
        %1098 = vmatprep.subr.bf16.mxu0 0
        %1099 = vmatpush1.bf16.msra.mxu0 0
        %1100 = vmatprep.subr.bf16.mxu0 0
        %1101 = vmatpush1.bf16.msra.mxu0 0
        %1102 = vmatprep.subr.bf16.mxu0 0
        %1103 = vmatpush1.bf16.msra.mxu0 0
        %1104 = vmatprep.subr.bf16.mxu0 0
        %1105 = vmatpush1.bf16.msra.mxu0 0
        %1106 = vmatprep.subr.bf16.mxu0 0
        %1107 = vmatpush1.bf16.msra.mxu0 0
        %1108 = vmatprep.subr.bf16.mxu0 0
        %1109 = vmatpush1.bf16.msra.mxu0 0
        %1110 = vmatprep.subr.bf16.mxu0 0
        %1111 = vmatpush1.bf16.msra.mxu0 0
        %1112 = vmatprep.subr.bf16.mxu0 0
        %1113 = vmatpush1.bf16.msra.mxu0 0
        %1114 = vmatprep.mubr.bf16.mxu0 0
        %1115 = vmatmul.mubr.bf16.gmra.mrb[0].mxu0 %v1010
        %v1116 = vpop.f32.mrb[0].mxu0
        %v1117 = vadd.f32 %v1032, %v1116
        %v1118 = vpop.f32.mrb[0].mxu0
        %v1119 = vpop.f32.mrb[0].mxu0
        %v1120 = vadd.f32 %v1032, %v1119
        %v1121 = vpop.f32.mrb[0].mxu0
        %1122 = vdwg.mxu0
        %1123 = vst [vmem:[%s244] sm:$0xff] %v1117
        %1124 = vst [vmem:[%s244 + $0x8] sm:$0xff] %v1120
        %s1125 = sand.u32 %s119, 1
        %s1126 = scalar_lea.sflag [#allocation4], %s1125
        %s1127 = sand.u32 %s119, 1
        %s1128 = smul.addr %s1127, 16
        %s1129 = scalar_lea.vmem [#allocation8], %s1128
        // Predicated region
        $region49: #{tpu_custom_call.1} parent=35 // pred_check
          %p1130 = pneg %p129
        $region50: #{tpu_custom_call.1} parent=35 // pred_check_branch
          %1132 = sbr.rel (%p1130) target = $region52
        $region51: #{tpu_custom_call.1} parent=35 // pred_region
          %s1134 = ssub.s32 256, 256
          %1135 = vsyncadd %s1126, %s1134
          %s1136 = smul.addr %s22, 2
          %s1137 = smul.addr %s1136, 128
          %s1138 = scalar_lea.hbm %s4, %s1137
          %s1139 = sshll.u32 %s1129, 4
          %s1140 = int_to_ptr.vmem [resolvable:$true] %s1139
          %1145 = dma.vmem_to_hbm [thread:$0]  %s1140, 256, %s1138, %s1126, 128, 128, 8
        $region52: #{tpu_custom_call.1} parent=35 // pred_fallthru
          _
      $region36: #{tpu_custom_call.1} parent=5 // pred_fallthru
        _
      %p1146 = scmp.le.s32.totalorder 2, %s17
      // Predicated region
      $region53: #{tpu_custom_call.1} parent=5 // pred_check
        %p1147 = pneg %p1146
      $region54: #{tpu_custom_call.1} parent=5 // pred_check_branch
        %1149 = sbr.rel (%p1147) target = $region56
      $region55: #{tpu_custom_call.1} parent=5 // pred_region
        %s1150 = ssub.s32 %s17, 2
        // Predicated region
        $region57: #{tpu_custom_call.1} parent=55 // pred_check
          %p1151 = pneg %p135
        $region58: #{tpu_custom_call.1} parent=55 // pred_check_branch
          %1153 = sbr.rel (%p1151) target = $region60
        $region59: #{tpu_custom_call.1} parent=55 // pred_region
          %s1154 = sand.u32 %s120, 1
          %s1155 = scalar_lea.sflag [#allocation4], %s1154
          %s1156 = sand.u32 %s120, 1
          %s1157 = smul.addr %s1156, 16
          %s1158 = scalar_lea.vmem [#allocation8], %s1157
          %1159 = dma.done %s1155, 256
        $region60: #{tpu_custom_call.1} parent=55 // pred_fallthru
          _
      $region56: #{tpu_custom_call.1} parent=5 // pred_fallthru
        _
    $region6: #{tpu_custom_call.1} parent=1 // loop_footer
      %s21 = sadd.s32 1, %s17
    $region7: #{tpu_custom_call.1} parent=1 // loop_footer_branch
      %16 = sbr.rel target = $region3
    $region8: #{tpu_custom_call.1} parent=1 // loop_exit
      _
    %1160 = vsyncpa [#allocation3], 1
    %s1161 = scalar_lea.sflag [#allocation3], 1
    %1162 = vsyncpa %s1161, 1
    %1163 = vsyncpa [#allocation6], 1
    %1164 = vsyncpa [#allocation4], 1
    %s1165 = scalar_lea.sflag [#allocation4], 1
    %1166 = vsyncpa %s1165, 1

// kernel: tpu_custom_call.1
$region0: #{tpu_custom_call.1}
  #allocation0 [shape = 'u32[]', space=smem, size = 0x4, offset = 0x4, fixed_abs, tag = 'smem constant byte address 0x4 - core index']
  #allocation1 [shape = 'u32[144,128]{1,0:T(1,128)}', space=vmem, size = 0x12000, scoped, tag = 'internal scratch']
  %s0 = inlined_call_operand.hbm [shape: f32[2,16,128], index: 0, kind: input, shape index: {}]
  %s1 = inlined_call_operand.hbm [shape: bf16[128,384], index: 1, kind: input, shape index: {}]
  %s2 = inlined_call_operand.hbm [shape: bf16[128,128], index: 2, kind: input, shape index: {}]
  %s3 = inlined_call_operand.vmem [shape: f32[1,128], index: 3, kind: input, shape index: {}]
  %s4 = inlined_call_operand.hbm [shape: f32[2,16,128], index: 4, kind: output, shape index: {}]
  %s5 = sld [smem:[#allocation0]]
  $region61: #{tpu_custom_call.1} parent=0
    _
  %s7 = ssub.s32 1, %s5
  %s8 = scalar_select 0, %s7, %s5
  $region1: #{tpu_custom_call.1} parent=0
    #allocation2 [shape = 'u8[16384]{0}', space=vmem, size = 0x4000, scoped, tag = 'input window, operand 0']
    #allocation3 [shape = 's32[2]{0}', space=sflag, size = 0x8, scoped, tag = 'scoped memory for tpu_custom_call.1']
    #allocation4 [shape = 's32[2]{0}', space=sflag, size = 0x8, scoped, tag = 'scoped memory for tpu_custom_call.1']
    #allocation5 [shape = 'u8[98304]{0}', space=vmem, size = 0x18000, scoped, tag = 'input window, operand 1, single buffered']
    #allocation6 [shape = 's32[1]{0}', space=sflag, size = 0x4, scoped, tag = 'scoped memory for tpu_custom_call.1']
    #allocation7 [shape = 'u8[32768]{0}', space=vmem, size = 0x8000, scoped, tag = 'input window, operand 2, single buffered']
    #allocation8 [shape = 'u8[16384]{0}', space=vmem, size = 0x4000, scoped, tag = 'output window, operand 0']
    %9 = vsyncpa [#allocation3], 0
    %s10 = scalar_lea.sflag [#allocation3], 1
    %11 = vsyncpa %s10, 0
    %12 = vsyncpa [#allocation6], 0
    %13 = vsyncpa [#allocation4], 0
    %s14 = scalar_lea.sflag [#allocation4], 1
    %15 = vsyncpa %s14, 0
    loop: start=0, step=1, limit=4
    $region2: #{tpu_custom_call.1} parent=1 // loop_pre_header
      _
    $region3: #{tpu_custom_call.1} parent=1 // loop_header
      %s17 = sphi 0, %s21
      %p18 = scmp.ge.s32.totalorder %s17, 4
      %s27 = sphi 0, %s29
      %s30 = sphi 0, %s27
      %s31 = sphi 0, %s30
      %s47 = sphi 0, %s31
      %s51 = sphi 0, %s51
      %s53 = sphi 0, %s51
      %s54 = sphi 0, %s53
      %s68 = sphi 0, %s54
      %s72 = sphi 0, %s72
      %s74 = sphi 0, %s72
      %s75 = sphi 0, %s74
      %s89 = sphi 0, %s75
      %s93 = sphi 0, %s93
      %s95 = sphi 0, %s93
      %s96 = sphi 0, %s95
      %s110 = sphi 0, %s96
      %s116 = sphi 0, %s118
      %s119 = sphi 0, %s116
      %s120 = sphi 0, %s119
      %s136 = sphi 0, %s120
    $region4: #{tpu_custom_call.1} parent=1 // loop_header_branch
      %20 = sbr.rel (%p18) target = $region8
    $region5: #{tpu_custom_call.1} parent=1 // loop_body
      %s22 = ssub.s32 %s17, 1
      %s23 = ssub.s32 %s17, 2
      %s24 = sadd.s32 %s17, 1
      %s25 = ssub.s32 %s17, %s24
      %p26 = scmp.eq.s32.totalorder %s25, 0
      %s28 = sadd.s32 %s27, 1
      %s29 = scalar_select %p26, %s27, %s28
      %p32 = pneg %p26
      %p33 = scmp.eq.s32.totalorder %s17, 1
      %p34 = por %p32, %p33
      %p35 = scmp.ne.s32.totalorder %s27, %s30
      %p36 = scmp.eq.s32.totalorder %s17, 0
      %p37 = por %p35, %p36
      %p38 = scmp.ne.s32.totalorder %s27, %s30
      %p39 = scmp.eq.s32.totalorder %s22, 1
      %p40 = por %p38, %p39
      %p41 = scmp.ne.s32.totalorder %s30, %s31
      %p42 = scmp.eq.s32.totalorder %s22, 0
      %p43 = por %p41, %p42
      %p44 = scmp.ne.s32.totalorder %s30, %s31
      %p45 = scmp.eq.s32.totalorder %s23, 1
      %p46 = por %p44, %p45
      %p48 = scmp.ne.s32.totalorder %s31, %s47
      %p49 = scmp.eq.s32.totalorder %s23, 0
      %p50 = por %p48, %p49
      %s52 = sadd.s32 %s51, 1
      %p55 = scmp.eq.s32.totalorder %s17, 1
      %p56 = scmp.ne.s32.totalorder %s51, %s53
      %p57 = scmp.eq.s32.totalorder %s17, 0
      %p58 = por %p56, %p57
      %p59 = scmp.ne.s32.totalorder %s51, %s53
      %p60 = scmp.eq.s32.totalorder %s22, 1
      %p61 = por %p59, %p60
      %p62 = scmp.ne.s32.totalorder %s53, %s54
      %p63 = scmp.eq.s32.totalorder %s22, 0
      %p64 = por %p62, %p63
      %p65 = scmp.ne.s32.totalorder %s53, %s54
      %p66 = scmp.eq.s32.totalorder %s23, 1
      %p67 = por %p65, %p66
      %p69 = scmp.ne.s32.totalorder %s54, %s68
      %p70 = scmp.eq.s32.totalorder %s23, 0
      %p71 = por %p69, %p70
      %s73 = sadd.s32 %s72, 1
      %p76 = scmp.eq.s32.totalorder %s17, 1
      %p77 = scmp.ne.s32.totalorder %s72, %s74
      %p78 = scmp.eq.s32.totalorder %s17, 0
      %p79 = por %p77, %p78
      %p80 = scmp.ne.s32.totalorder %s72, %s74
      %p81 = scmp.eq.s32.totalorder %s22, 1
      %p82 = por %p80, %p81
      %p83 = scmp.ne.s32.totalorder %s74, %s75
      %p84 = scmp.eq.s32.totalorder %s22, 0
      %p85 = por %p83, %p84
      %p86 = scmp.ne.s32.totalorder %s74, %s75
      %p87 = scmp.eq.s32.totalorder %s23, 1
      %p88 = por %p86, %p87
      %p90 = scmp.ne.s32.totalorder %s75, %s89
      %p91 = scmp.eq.s32.totalorder %s23, 0
      %p92 = por %p90, %p91
      %s94 = sadd.s32 %s93, 1
      %p97 = scmp.eq.s32.totalorder %s17, 1
      %p98 = scmp.ne.s32.totalorder %s93, %s95
      %p99 = scmp.eq.s32.totalorder %s17, 0
      %p100 = por %p98, %p99
      %p101 = scmp.ne.s32.totalorder %s93, %s95
      %p102 = scmp.eq.s32.totalorder %s22, 1
      %p103 = por %p101, %p102
      %p104 = scmp.ne.s32.totalorder %s95, %s96
      %p105 = scmp.eq.s32.totalorder %s22, 0
      %p106 = por %p104, %p105
      %p107 = scmp.ne.s32.totalorder %s95, %s96
      %p108 = scmp.eq.s32.totalorder %s23, 1
      %p109 = por %p107, %p108
      %p111 = scmp.ne.s32.totalorder %s96, %s110
      %p112 = scmp.eq.s32.totalorder %s23, 0
      %p113 = por %p111, %p112
      %s114 = ssub.s32 %s17, %s24
      %p115 = scmp.eq.s32.totalorder %s114, 0
      %s117 = sadd.s32 %s116, 1
      %s118 = scalar_select %p115, %s116, %s117
      %p121 = pneg %p115
      %p122 = scmp.eq.s32.totalorder %s17, 1
      %p123 = por %p121, %p122
      %p124 = scmp.ne.s32.totalorder %s116, %s119
      %p125 = scmp.eq.s32.totalorder %s17, 0
      %p126 = por %p124, %p125
      %p127 = scmp.ne.s32.totalorder %s116, %s119
      %p128 = scmp.eq.s32.totalorder %s22, 1
      %p129 = por %p127, %p128
      %p130 = scmp.ne.s32.totalorder %s119, %s120
      %p131 = scmp.eq.s32.totalorder %s22, 0
      %p132 = por %p130, %p131
      %p133 = scmp.ne.s32.totalorder %s119, %s120
      %p134 = scmp.eq.s32.totalorder %s23, 1
      %p135 = por %p133, %p134
      %p137 = scmp.ne.s32.totalorder %s120, %s136
      %p138 = scmp.eq.s32.totalorder %s23, 0
      %p139 = por %p137, %p138
      %p140 = scmp.le.s32.totalorder 1, %s17
      %p141 = scmp.lt.s32.totalorder %s17, 3
      %p142 = pnand %p140, %p141
      %p143 = pneg %p142
      // Predicated region
      $region9: #{tpu_custom_call.1} parent=5 // pred_check
        _
      $region10: #{tpu_custom_call.1} parent=5 // pred_check_branch
        %145 = sbr.rel (%p142) target = $region12
      $region11: #{tpu_custom_call.1} parent=5 // pred_region
        %s146 = ssub.s32 %s17, 1
        // Predicated region
        $region13: #{tpu_custom_call.1} parent=11 // pred_check
          %p147 = pneg %p64
        $region14: #{tpu_custom_call.1} parent=11 // pred_check_branch
          %149 = sbr.rel (%p147) target = $region16
        $region15: #{tpu_custom_call.1} parent=11 // pred_region
          %s151 = ssub.s32 3072, 3072
          %152 = vsyncadd [#allocation6], %s151
          %s153 = sshll.u32 [#allocation5], 4
          %s154 = int_to_ptr.vmem [resolvable:$true] %s153
          %159 = dma.hbm_to_vmem [thread:$0]  %s1, 3072, %s154, [#allocation6], 192, 192, 12
        $region16: #{tpu_custom_call.1} parent=11 // pred_fallthru
          _
        // Predicated region
        $region17: #{tpu_custom_call.1} parent=11 // pred_check
          %p160 = pneg %p85
        $region18: #{tpu_custom_call.1} parent=11 // pred_check_branch
          %162 = sbr.rel (%p160) target = $region20
        $region19: #{tpu_custom_call.1} parent=11 // pred_region
          %s164 = ssub.s32 1024, 1024
          %165 = vsyncadd [#allocation6], %s164
          %s166 = sshll.u32 [#allocation7], 4
          %s167 = int_to_ptr.vmem [resolvable:$true] %s166
          %172 = dma.hbm_to_vmem [thread:$0]  %s2, 1024, %s167, [#allocation6], 64, 64, 4
        $region20: #{tpu_custom_call.1} parent=11 // pred_fallthru
          _
        // Predicated region
        $region21: #{tpu_custom_call.1} parent=11 // pred_check
          %p173 = pneg %p106
        $region22: #{tpu_custom_call.1} parent=11 // pred_check_branch
          %175 = sbr.rel (%p173) target = $region24
        $region23: #{tpu_custom_call.1} parent=11 // pred_region
          _
        $region24: #{tpu_custom_call.1} parent=11 // pred_fallthru
          _
      $region12: #{tpu_custom_call.1} parent=5 // pred_fallthru
        _
      %p176 = scmp.lt.s32.totalorder %s17, 2
      // Predicated region
      $region25: #{tpu_custom_call.1} parent=5 // pred_check
        %p177 = pneg %p176
      $region26: #{tpu_custom_call.1} parent=5 // pred_check_branch
        %179 = sbr.rel (%p177) target = $region28
      $region27: #{tpu_custom_call.1} parent=5 // pred_region
        // Predicated region
        $region29: #{tpu_custom_call.1} parent=27 // pred_check
          %p180 = pneg %p37
        $region30: #{tpu_custom_call.1} parent=27 // pred_check_branch
          %182 = sbr.rel (%p180) target = $region32
        $region31: #{tpu_custom_call.1} parent=27 // pred_region
          %s183 = sand.u32 %s27, 1
          %s184 = scalar_lea.sflag [#allocation3], %s183
          %s185 = sand.u32 %s27, 1
          %s186 = smul.addr %s185, 16
          %s187 = scalar_lea.vmem [#allocation2], %s186
          %s189 = ssub.s32 256, 256
          %190 = vsyncadd %s184, %s189
          %s191 = smul.addr %s17, 2
          %s192 = smul.addr %s191, 128
          %s193 = scalar_lea.hbm %s0, %s192
          %s194 = sshll.u32 %s187, 4
          %s195 = int_to_ptr.vmem [resolvable:$true] %s194
          %200 = dma.hbm_to_vmem [thread:$0]  %s193, 256, %s195, %s184, 128, 128, 8
        $region32: #{tpu_custom_call.1} parent=27 // pred_fallthru
          _
      $region28: #{tpu_custom_call.1} parent=5 // pred_fallthru
        _
      %p201 = scmp.le.s32.totalorder 1, %s17
      %p202 = scmp.lt.s32.totalorder %s17, 3
      %p203 = pnand %p201, %p202
      %p204 = pneg %p203
      // Predicated region
      $region33: #{tpu_custom_call.1} parent=5 // pred_check
        _
      $region34: #{tpu_custom_call.1} parent=5 // pred_check_branch
        %206 = sbr.rel (%p203) target = $region36
      $region35: #{tpu_custom_call.1} parent=5 // pred_region
        %s207 = ssub.s32 %s17, 1
        %s208 = sand.u32 %s30, 1
        %s209 = scalar_lea.sflag [#allocation3], %s208
        %s210 = sand.u32 %s30, 1
        %s211 = smul.addr %s210, 16
        %s212 = scalar_lea.vmem [#allocation2], %s211
        // Predicated region
        $region37: #{tpu_custom_call.1} parent=35 // pred_check
          %p213 = pneg %p43
        $region38: #{tpu_custom_call.1} parent=35 // pred_check_branch
          %215 = sbr.rel (%p213) target = $region40
        $region39: #{tpu_custom_call.1} parent=35 // pred_region
          %216 = dma.done %s209, 256
        $region40: #{tpu_custom_call.1} parent=35 // pred_fallthru
          _
        // Predicated region
        $region41: #{tpu_custom_call.1} parent=35 // pred_check
          %p217 = pneg %p64
        $region42: #{tpu_custom_call.1} parent=35 // pred_check_branch
          %219 = sbr.rel (%p217) target = $region44
        $region43: #{tpu_custom_call.1} parent=35 // pred_region
          %220 = dma.done [#allocation6], 3072
        $region44: #{tpu_custom_call.1} parent=35 // pred_fallthru
          _
        // Predicated region
        $region45: #{tpu_custom_call.1} parent=35 // pred_check
          %p221 = pneg %p85
        $region46: #{tpu_custom_call.1} parent=35 // pred_check_branch
          %223 = sbr.rel (%p221) target = $region48
        $region47: #{tpu_custom_call.1} parent=35 // pred_region
          %224 = dma.done [#allocation6], 1024
        $region48: #{tpu_custom_call.1} parent=35 // pred_fallthru
          _
        %s225 = sand.u32 %s30, 1
        %s226 = scalar_lea.sflag [#allocation3], %s225
        %s227 = sand.u32 %s30, 1
        %s228 = smul.addr %s227, 16
        %s229 = scalar_lea.vmem [#allocation2], %s228
        %p230 = pneg %p43
        %p231 = pneg %p40
        %p232 = pneg %p64
        %p233 = pneg %p61
        %p234 = pneg %p85
        %p235 = pneg %p82
        %p236 = pneg %p106
        %p237 = pneg %p103
        %p238 = pneg %p132
        %p239 = pneg %p129
        %s240 = sand.u32 %s119, 1
        %s241 = scalar_lea.sflag [#allocation4], %s240
        %s242 = sand.u32 %s119, 1
        %s243 = smul.addr %s242, 16
        %s244 = scalar_lea.vmem [#allocation8], %s243
        %v246 = vld [vmem:[%s212] sm:$0xff]
        %v247 = vld [vmem:[%s212 + $0x8] sm:$0xff]
        %v248 = vpack.c.bf16 %v247, %v246
        %v249 = vld [vmem:[#allocation5] sm:$0xff]
        %v250 = vld [vmem:[#allocation5 + $0x8] sm:$0xf]
        %v251 = vld [vmem:[#allocation5 + $0xc] sm:$0xff]
        %v252 = vld [vmem:[#allocation5 + $0x14] sm:$0xf]
        %v253 = vld [vmem:[#allocation5 + $0x18] sm:$0xff]
        %v254 = vld [vmem:[#allocation5 + $0x20] sm:$0xf]
        %v255 = vld [vmem:[#allocation5 + $0x24] sm:$0xff]
        %v256 = vld [vmem:[#allocation5 + $0x2c] sm:$0xf]
        %v257 = vld [vmem:[#allocation5 + $0x30] sm:$0xff]
        %v258 = vld [vmem:[#allocation5 + $0x38] sm:$0xf]
        %v259 = vld [vmem:[#allocation5 + $0x3c] sm:$0xff]
        %v260 = vld [vmem:[#allocation5 + $0x44] sm:$0xf]
        %v261 = vld [vmem:[#allocation5 + $0x48] sm:$0xff]
        %v262 = vld [vmem:[#allocation5 + $0x50] sm:$0xf]
        %v263 = vld [vmem:[#allocation5 + $0x54] sm:$0xff]
        %v264 = vld [vmem:[#allocation5 + $0x5c] sm:$0xf]
        %v265 = vld [vmem:[#allocation5 + $0x60] sm:$0xff]
        %v266 = vld [vmem:[#allocation5 + $0x68] sm:$0xf]
        %v267 = vld [vmem:[#allocation5 + $0x6c] sm:$0xff]
        %v268 = vld [vmem:[#allocation5 + $0x74] sm:$0xf]
        %v269 = vld [vmem:[#allocation5 + $0x78] sm:$0xff]
        %v270 = vld [vmem:[#allocation5 + $0x80] sm:$0xf]
        %v271 = vld [vmem:[#allocation5 + $0x84] sm:$0xff]
        %v272 = vld [vmem:[#allocation5 + $0x8c] sm:$0xf]
        %v273 = vld [vmem:[#allocation5 + $0x90] sm:$0xff]
        %v274 = vld [vmem:[#allocation5 + $0x98] sm:$0xf]
        %v275 = vld [vmem:[#allocation5 + $0x9c] sm:$0xff]
        %v276 = vld [vmem:[#allocation5 + $0xa4] sm:$0xf]
        %v277 = vld [vmem:[#allocation5 + $0xa8] sm:$0xff]
        %v278 = vld [vmem:[#allocation5 + $0xb0] sm:$0xf]
        %v279 = vld [vmem:[#allocation5 + $0xb4] sm:$0xff]
        %v280 = vld [vmem:[#allocation5 + $0xbc] sm:$0xf]
        %v313 = vunpack.c.l.b16 %v249
        %v314 = vunpack.c.h.b16 %v249
        %v315 = vunpack.c.l.b16 %v250
        %v316 = vunpack.c.l.b16 %v251
        %v317 = vunpack.c.h.b16 %v251
        %v318 = vunpack.c.l.b16 %v252
        %v319 = vunpack.c.l.b16 %v253
        %v320 = vunpack.c.h.b16 %v253
        %v321 = vunpack.c.l.b16 %v254
        %v322 = vunpack.c.l.b16 %v255
        %v323 = vunpack.c.h.b16 %v255
        %v324 = vunpack.c.l.b16 %v256
        %v325 = vunpack.c.l.b16 %v257
        %v326 = vunpack.c.h.b16 %v257
        %v327 = vunpack.c.l.b16 %v258
        %v328 = vunpack.c.l.b16 %v259
        %v329 = vunpack.c.h.b16 %v259
        %v330 = vunpack.c.l.b16 %v260
        %v331 = vunpack.c.l.b16 %v261
        %v332 = vunpack.c.h.b16 %v261
        %v333 = vunpack.c.l.b16 %v262
        %v334 = vunpack.c.l.b16 %v263
        %v335 = vunpack.c.h.b16 %v263
        %v336 = vunpack.c.l.b16 %v264
        %v337 = vunpack.c.l.b16 %v265
        %v338 = vunpack.c.h.b16 %v265
        %v339 = vunpack.c.l.b16 %v266
        %v340 = vunpack.c.l.b16 %v267
        %v341 = vunpack.c.h.b16 %v267
        %v342 = vunpack.c.l.b16 %v268
        %v343 = vunpack.c.l.b16 %v269
        %v344 = vunpack.c.h.b16 %v269
        %v345 = vunpack.c.l.b16 %v270
        %v346 = vunpack.c.l.b16 %v271
        %v347 = vunpack.c.h.b16 %v271
        %v348 = vunpack.c.l.b16 %v272
        %v349 = vunpack.c.l.b16 %v273
        %v350 = vunpack.c.h.b16 %v273
        %v351 = vunpack.c.l.b16 %v274
        %v352 = vunpack.c.l.b16 %v275
        %v353 = vunpack.c.h.b16 %v275
        %v354 = vunpack.c.l.b16 %v276
        %v355 = vunpack.c.l.b16 %v277
        %v356 = vunpack.c.h.b16 %v277
        %v357 = vunpack.c.l.b16 %v278
        %v358 = vunpack.c.l.b16 %v279
        %v359 = vunpack.c.h.b16 %v279
        %v360 = vunpack.c.l.b16 %v280
        %v361 = vpack.c.b16 %v316, %v313
        %v362 = vpack.c.b16 %v317, %v314
        %v363 = vpack.c.b16 %v318, %v315
        %v364 = vpack.c.b16 %v322, %v319
        %v365 = vpack.c.b16 %v323, %v320
        %v366 = vpack.c.b16 %v324, %v321
        %v367 = vpack.c.b16 %v328, %v325
        %v368 = vpack.c.b16 %v329, %v326
        %v369 = vpack.c.b16 %v330, %v327
        %v370 = vpack.c.b16 %v334, %v331
        %v371 = vpack.c.b16 %v335, %v332
        %v372 = vpack.c.b16 %v336, %v333
        %v373 = vpack.c.b16 %v340, %v337
        %v374 = vpack.c.b16 %v341, %v338
        %v375 = vpack.c.b16 %v342, %v339
        %v376 = vpack.c.b16 %v346, %v343
        %v377 = vpack.c.b16 %v347, %v344
        %v378 = vpack.c.b16 %v348, %v345
        %v379 = vpack.c.b16 %v352, %v349
        %v380 = vpack.c.b16 %v353, %v350
        %v381 = vpack.c.b16 %v354, %v351
        %v382 = vpack.c.b16 %v358, %v355
        %v383 = vpack.c.b16 %v359, %v356
        %v384 = vpack.c.b16 %v360, %v357
        %409 = vmatprep.subr.bf16.mxu0 %v362
        %410 = vmatpush1.bf16.msra.mxu0 %v361
        %411 = vmatprep.subr.bf16.mxu0 %v365
        %412 = vmatpush1.bf16.msra.mxu0 %v364
        %413 = vmatprep.subr.bf16.mxu0 %v368
        %414 = vmatpush1.bf16.msra.mxu0 %v367
        %415 = vmatprep.subr.bf16.mxu0 %v371
        %416 = vmatpush1.bf16.msra.mxu0 %v370
        %417 = vmatprep.subr.bf16.mxu0 %v374
        %418 = vmatpush1.bf16.msra.mxu0 %v373
        %419 = vmatprep.subr.bf16.mxu0 %v377
        %420 = vmatpush1.bf16.msra.mxu0 %v376
        %421 = vmatprep.subr.bf16.mxu0 %v380
        %422 = vmatpush1.bf16.msra.mxu0 %v379
        %423 = vmatprep.subr.bf16.mxu0 %v383
        %424 = vmatpush1.bf16.msra.mxu0 %v382
        %425 = vmatprep.subr.bf16.mxu0 0
        %426 = vmatpush1.bf16.msra.mxu0 0
        %427 = vmatprep.subr.bf16.mxu0 0
        %428 = vmatpush1.bf16.msra.mxu0 0
        %429 = vmatprep.subr.bf16.mxu0 0
        %430 = vmatpush1.bf16.msra.mxu0 0
        %431 = vmatprep.subr.bf16.mxu0 0
        %432 = vmatpush1.bf16.msra.mxu0 0
        %433 = vmatprep.subr.bf16.mxu0 0
        %434 = vmatpush1.bf16.msra.mxu0 0
        %435 = vmatprep.subr.bf16.mxu0 0
        %436 = vmatpush1.bf16.msra.mxu0 0
        %437 = vmatprep.subr.bf16.mxu0 0
        %438 = vmatpush1.bf16.msra.mxu0 0
        %439 = vmatprep.subr.bf16.mxu0 0
        %440 = vmatpush1.bf16.msra.mxu0 0
        %441 = vmatprep.mubr.bf16.mxu0 0
        %442 = vmatmul.mubr.bf16.gmra.mrb[0].mxu0 %v248
        %v443 = vpop.f32.mrb[0].mxu0
        %v444 = vadd.f32 0.0, %v443
        %v445 = vpop.f32.mrb[0].mxu0
        %v446 = vadd.f32 0.0, %v445
        %v447 = vpop.f32.mrb[0].mxu0
        %v448 = vadd.f32 0.0, %v447
        %v449 = vpop.f32.mrb[0].mxu0
        %v450 = vadd.f32 0.0, %v449
        %451 = vdwg.mxu0
        %452 = vmatprep.subr.bf16.mxu0 0
        %453 = vmatpush1.bf16.msra.mxu0 %v363
        %454 = vmatprep.subr.bf16.mxu0 0
        %455 = vmatpush1.bf16.msra.mxu0 %v366
        %456 = vmatprep.subr.bf16.mxu0 0
        %457 = vmatpush1.bf16.msra.mxu0 %v369
        %458 = vmatprep.subr.bf16.mxu0 0
        %459 = vmatpush1.bf16.msra.mxu0 %v372
        %460 = vmatprep.subr.bf16.mxu0 0
        %461 = vmatpush1.bf16.msra.mxu0 %v375
        %462 = vmatprep.subr.bf16.mxu0 0
        %463 = vmatpush1.bf16.msra.mxu0 %v378
        %464 = vmatprep.subr.bf16.mxu0 0
        %465 = vmatpush1.bf16.msra.mxu0 %v381
        %466 = vmatprep.subr.bf16.mxu0 0
        %467 = vmatpush1.bf16.msra.mxu0 %v384
        %468 = vmatprep.subr.bf16.mxu0 0
        %469 = vmatpush1.bf16.msra.mxu0 0
        %470 = vmatprep.subr.bf16.mxu0 0
        %471 = vmatpush1.bf16.msra.mxu0 0
        %472 = vmatprep.subr.bf16.mxu0 0
        %473 = vmatpush1.bf16.msra.mxu0 0
        %474 = vmatprep.subr.bf16.mxu0 0
        %475 = vmatpush1.bf16.msra.mxu0 0
        %476 = vmatprep.subr.bf16.mxu0 0
        %477 = vmatpush1.bf16.msra.mxu0 0
        %478 = vmatprep.subr.bf16.mxu0 0
        %479 = vmatpush1.bf16.msra.mxu0 0
        %480 = vmatprep.subr.bf16.mxu0 0
        %481 = vmatpush1.bf16.msra.mxu0 0
        %482 = vmatprep.subr.bf16.mxu0 0
        %483 = vmatpush1.bf16.msra.mxu0 0
        %484 = vmatprep.mubr.bf16.mxu0 0
        %485 = vmatmul.mubr.bf16.gmra.mrb[0].mxu0 %v248
        %v486 = vpop.f32.mrb[0].mxu0
        %v487 = vadd.f32 0.0, %v486
        %v488 = vpop.f32.mrb[0].mxu0
        %v489 = vpop.f32.mrb[0].mxu0
        %v490 = vadd.f32 0.0, %v489
        %v491 = vpop.f32.mrb[0].mxu0
        %492 = vdwg.mxu0
        %v493 = vpack.c.bf16 %v448, %v444
        %v494 = vpack.c.bf16 %v450, %v446
        %v495 = vpack.c.bf16 %v490, %v487
        %497 = vrot.lane.b32.xlu0 %v493, 96
        %v498 = vpop.permute.xlu0 %497
        %499 = vrot.lane.b32.xlu0 %v493, 64
        %v500 = vpop.permute.xlu0 %499
        %501 = vrot.lane.b32.xlu0 %v493, 32
        %v502 = vpop.permute.xlu0 %501
        %504 = vrot.lane.b32.xlu0 %v494, 96
        %v505 = vpop.permute.xlu0 %504
        %506 = vrot.lane.b32.xlu0 %v494, 64
        %v507 = vpop.permute.xlu0 %506
        %508 = vrot.lane.b32.xlu0 %v494, 32
        %v509 = vpop.permute.xlu0 %508
        %511 = vrot.lane.b32.xlu0 %v495, 96
        %v512 = vpop.permute.xlu0 %511
        %514 = vrot.lane.b32.xlu0 %v495, 64
        %v515 = vpop.permute.xlu0 %514
        %517 = vrot.lane.b32.xlu0 %v495, 32
        %v518 = vpop.permute.xlu0 %517
        %vm520 = vcmask 261120
        %v522 = vsel %vm520, %v493, 0
        %v525 = vsel %vm520, %v494, 0
        %527 = vmatprep.subr.bf16.mxu0 0
        %528 = vmatpush1.bf16.xpose.msra.mxu0 %v525
        %529 = vmatprep.subr.bf16.mxu0 0
        %530 = vmatpush1.bf16.xpose.msra.mxu0 0
        %531 = vmatprep.subr.bf16.mxu0 0
        %532 = vmatpush1.bf16.xpose.msra.mxu0 0
        %533 = vmatprep.subr.bf16.mxu0 0
        %534 = vmatpush1.bf16.xpose.msra.mxu0 0
        %535 = vmatprep.subr.bf16.mxu0 0
        %536 = vmatpush1.bf16.xpose.msra.mxu0 0
        %537 = vmatprep.subr.bf16.mxu0 0
        %538 = vmatpush1.bf16.xpose.msra.mxu0 0
        %539 = vmatprep.subr.bf16.mxu0 0
        %540 = vmatpush1.bf16.xpose.msra.mxu0 0
        %541 = vmatprep.subr.bf16.mxu0 0
        %542 = vmatpush1.bf16.xpose.msra.mxu0 0
        %543 = vmatprep.subr.bf16.mxu0 0
        %544 = vmatpush1.bf16.xpose.msra.mxu0 0
        %545 = vmatprep.subr.bf16.mxu0 0
        %546 = vmatpush1.bf16.xpose.msra.mxu0 0
        %547 = vmatprep.subr.bf16.mxu0 0
        %548 = vmatpush1.bf16.xpose.msra.mxu0 0
        %549 = vmatprep.subr.bf16.mxu0 0
        %550 = vmatpush1.bf16.xpose.msra.mxu0 0
        %551 = vmatprep.subr.bf16.mxu0 0
        %552 = vmatpush1.bf16.xpose.msra.mxu0 0
        %553 = vmatprep.subr.bf16.mxu0 0
        %554 = vmatpush1.bf16.xpose.msra.mxu0 0
        %555 = vmatprep.subr.bf16.mxu0 0
        %556 = vmatpush1.bf16.xpose.msra.mxu0 0
        %557 = vmatprep.subr.bf16.mxu0 0
        %558 = vmatpush1.bf16.xpose.msra.mxu0 0
        %559 = vmatprep.mubr.bf16.mxu0 0
        %560 = vmatmul.mubr.bf16.gmra.mrb[0].mxu0 %v522
        %v561 = vpop.f32.mrb[0].mxu0
        %v562 = vadd.f32 0.0, %v561
        %v563 = vpop.f32.mrb[0].mxu0
        %v564 = vpop.f32.mrb[0].mxu0
        %v565 = vadd.f32 0.0, %v564
        %v566 = vpop.f32.mrb[0].mxu0
        %567 = vdwg.mxu0
        %v569 = vsel %vm520, %v498, 0
        %v572 = vsel %vm520, %v505, 0
        %574 = vmatprep.subr.bf16.mxu0 0
        %575 = vmatpush1.bf16.xpose.msra.mxu0 %v572
        %576 = vmatprep.subr.bf16.mxu0 0
        %577 = vmatpush1.bf16.xpose.msra.mxu0 0
        %578 = vmatprep.subr.bf16.mxu0 0
        %579 = vmatpush1.bf16.xpose.msra.mxu0 0
        %580 = vmatprep.subr.bf16.mxu0 0
        %581 = vmatpush1.bf16.xpose.msra.mxu0 0
        %582 = vmatprep.subr.bf16.mxu0 0
        %583 = vmatpush1.bf16.xpose.msra.mxu0 0
        %584 = vmatprep.subr.bf16.mxu0 0
        %585 = vmatpush1.bf16.xpose.msra.mxu0 0
        %586 = vmatprep.subr.bf16.mxu0 0
        %587 = vmatpush1.bf16.xpose.msra.mxu0 0
        %588 = vmatprep.subr.bf16.mxu0 0
        %589 = vmatpush1.bf16.xpose.msra.mxu0 0
        %590 = vmatprep.subr.bf16.mxu0 0
        %591 = vmatpush1.bf16.xpose.msra.mxu0 0
        %592 = vmatprep.subr.bf16.mxu0 0
        %593 = vmatpush1.bf16.xpose.msra.mxu0 0
        %594 = vmatprep.subr.bf16.mxu0 0
        %595 = vmatpush1.bf16.xpose.msra.mxu0 0
        %596 = vmatprep.subr.bf16.mxu0 0
        %597 = vmatpush1.bf16.xpose.msra.mxu0 0
        %598 = vmatprep.subr.bf16.mxu0 0
        %599 = vmatpush1.bf16.xpose.msra.mxu0 0
        %600 = vmatprep.subr.bf16.mxu0 0
        %601 = vmatpush1.bf16.xpose.msra.mxu0 0
        %602 = vmatprep.subr.bf16.mxu0 0
        %603 = vmatpush1.bf16.xpose.msra.mxu0 0
        %604 = vmatprep.subr.bf16.mxu0 0
        %605 = vmatpush1.bf16.xpose.msra.mxu0 0
        %606 = vmatprep.mubr.bf16.mxu0 0
        %607 = vmatmul.mubr.bf16.gmra.mrb[0].mxu0 %v569
        %v608 = vpop.f32.mrb[0].mxu0
        %v609 = vadd.f32 0.0, %v608
        %v610 = vpop.f32.mrb[0].mxu0
        %v611 = vpop.f32.mrb[0].mxu0
        %v612 = vadd.f32 0.0, %v611
        %v613 = vpop.f32.mrb[0].mxu0
        %614 = vdwg.mxu0
        %v616 = vsel %vm520, %v500, 0
        %v619 = vsel %vm520, %v507, 0
        %621 = vmatprep.subr.bf16.mxu0 0
        %622 = vmatpush1.bf16.xpose.msra.mxu0 %v619
        %623 = vmatprep.subr.bf16.mxu0 0
        %624 = vmatpush1.bf16.xpose.msra.mxu0 0
        %625 = vmatprep.subr.bf16.mxu0 0
        %626 = vmatpush1.bf16.xpose.msra.mxu0 0
        %627 = vmatprep.subr.bf16.mxu0 0
        %628 = vmatpush1.bf16.xpose.msra.mxu0 0
        %629 = vmatprep.subr.bf16.mxu0 0
        %630 = vmatpush1.bf16.xpose.msra.mxu0 0
        %631 = vmatprep.subr.bf16.mxu0 0
        %632 = vmatpush1.bf16.xpose.msra.mxu0 0
        %633 = vmatprep.subr.bf16.mxu0 0
        %634 = vmatpush1.bf16.xpose.msra.mxu0 0
        %635 = vmatprep.subr.bf16.mxu0 0
        %636 = vmatpush1.bf16.xpose.msra.mxu0 0
        %637 = vmatprep.subr.bf16.mxu0 0
        %638 = vmatpush1.bf16.xpose.msra.mxu0 0
        %639 = vmatprep.subr.bf16.mxu0 0
        %640 = vmatpush1.bf16.xpose.msra.mxu0 0
        %641 = vmatprep.subr.bf16.mxu0 0
        %642 = vmatpush1.bf16.xpose.msra.mxu0 0
        %643 = vmatprep.subr.bf16.mxu0 0
        %644 = vmatpush1.bf16.xpose.msra.mxu0 0
        %645 = vmatprep.subr.bf16.mxu0 0
        %646 = vmatpush1.bf16.xpose.msra.mxu0 0
        %647 = vmatprep.subr.bf16.mxu0 0
        %648 = vmatpush1.bf16.xpose.msra.mxu0 0
        %649 = vmatprep.subr.bf16.mxu0 0
        %650 = vmatpush1.bf16.xpose.msra.mxu0 0
        %651 = vmatprep.subr.bf16.mxu0 0
        %652 = vmatpush1.bf16.xpose.msra.mxu0 0
        %653 = vmatprep.mubr.bf16.mxu0 0
        %654 = vmatmul.mubr.bf16.gmra.mrb[0].mxu0 %v616
        %v655 = vpop.f32.mrb[0].mxu0
        %v656 = vadd.f32 0.0, %v655
        %v657 = vpop.f32.mrb[0].mxu0
        %v658 = vpop.f32.mrb[0].mxu0
        %v659 = vadd.f32 0.0, %v658
        %v660 = vpop.f32.mrb[0].mxu0
        %661 = vdwg.mxu0
        %v663 = vsel %vm520, %v502, 0
        %v666 = vsel %vm520, %v509, 0
        %668 = vmatprep.subr.bf16.mxu0 0
        %669 = vmatpush1.bf16.xpose.msra.mxu0 %v666
        %670 = vmatprep.subr.bf16.mxu0 0
        %671 = vmatpush1.bf16.xpose.msra.mxu0 0
        %672 = vmatprep.subr.bf16.mxu0 0
        %673 = vmatpush1.bf16.xpose.msra.mxu0 0
        %674 = vmatprep.subr.bf16.mxu0 0
        %675 = vmatpush1.bf16.xpose.msra.mxu0 0
        %676 = vmatprep.subr.bf16.mxu0 0
        %677 = vmatpush1.bf16.xpose.msra.mxu0 0
        %678 = vmatprep.subr.bf16.mxu0 0
        %679 = vmatpush1.bf16.xpose.msra.mxu0 0
        %680 = vmatprep.subr.bf16.mxu0 0
        %681 = vmatpush1.bf16.xpose.msra.mxu0 0
        %682 = vmatprep.subr.bf16.mxu0 0
        %683 = vmatpush1.bf16.xpose.msra.mxu0 0
        %684 = vmatprep.subr.bf16.mxu0 0
        %685 = vmatpush1.bf16.xpose.msra.mxu0 0
        %686 = vmatprep.subr.bf16.mxu0 0
        %687 = vmatpush1.bf16.xpose.msra.mxu0 0
        %688 = vmatprep.subr.bf16.mxu0 0
        %689 = vmatpush1.bf16.xpose.msra.mxu0 0
        %690 = vmatprep.subr.bf16.mxu0 0
        %691 = vmatpush1.bf16.xpose.msra.mxu0 0
        %692 = vmatprep.subr.bf16.mxu0 0
        %693 = vmatpush1.bf16.xpose.msra.mxu0 0
        %694 = vmatprep.subr.bf16.mxu0 0
        %695 = vmatpush1.bf16.xpose.msra.mxu0 0
        %696 = vmatprep.subr.bf16.mxu0 0
        %697 = vmatpush1.bf16.xpose.msra.mxu0 0
        %698 = vmatprep.subr.bf16.mxu0 0
        %699 = vmatpush1.bf16.xpose.msra.mxu0 0
        %700 = vmatprep.mubr.bf16.mxu0 0
        %701 = vmatmul.mubr.bf16.gmra.mrb[0].mxu0 %v663
        %v702 = vpop.f32.mrb[0].mxu0
        %v703 = vadd.f32 0.0, %v702
        %v704 = vpop.f32.mrb[0].mxu0
        %v705 = vpop.f32.mrb[0].mxu0
        %v706 = vadd.f32 0.0, %v705
        %v707 = vpop.f32.mrb[0].mxu0
        %708 = vdwg.mxu0
        %vm709 = vcmask 130048
        %v710 = vsel %vm709, %v562, -inf
        %711 = vmax.xlane.f32.xlu0 %v710
        %v712 = vpop.xlane.xlu0 %711
        %v713 = vsel %vm709, %v565, -inf
        %714 = vmax.xlane.f32.xlu0 %v713
        %v715 = vpop.xlane.xlu0 %714
        %v716 = vsel %vm709, %v609, -inf
        %717 = vmax.xlane.f32.xlu0 %v716
        %v718 = vpop.xlane.xlu0 %717
        %v719 = vsel %vm709, %v612, -inf
        %720 = vmax.xlane.f32.xlu0 %v719
        %v721 = vpop.xlane.xlu0 %720
        %v722 = vsel %vm709, %v656, -inf
        %723 = vmax.xlane.f32.xlu0 %v722
        %v724 = vpop.xlane.xlu0 %723
        %v725 = vsel %vm709, %v659, -inf
        %726 = vmax.xlane.f32.xlu0 %v725
        %v727 = vpop.xlane.xlu0 %726
        %v728 = vsel %vm709, %v703, -inf
        %729 = vmax.xlane.f32.xlu0 %v728
        %v730 = vpop.xlane.xlu0 %729
        %v731 = vsel %vm709, %v706, -inf
        %732 = vmax.xlane.f32.xlu0 %v731
        %v733 = vpop.xlane.xlu0 %732
        %v734 = vsub.f32 %v562, %v712
        %v735 = vsub.f32 %v565, %v715
        %v736 = vsub.f32 %v609, %v718
        %v737 = vsub.f32 %v612, %v721
        %v738 = vsub.f32 %v656, %v724
        %v739 = vsub.f32 %v659, %v727
        %v740 = vsub.f32 %v703, %v730
        %v741 = vsub.f32 %v706, %v733
        %v742 = vmul.f32 %v734, 1.442695
        %v743 = vpow.pop %v742
        %v744 = vmul.f32 %v735, 1.442695
        %v745 = vpow.pop %v744
        %v746 = vmul.f32 %v736, 1.442695
        %v747 = vpow.pop %v746
        %v748 = vmul.f32 %v737, 1.442695
        %v749 = vpow.pop %v748
        %v750 = vmul.f32 %v738, 1.442695
        %v751 = vpow.pop %v750
        %v752 = vmul.f32 %v739, 1.442695
        %v753 = vpow.pop %v752
        %v754 = vmul.f32 %v740, 1.442695
        %v755 = vpow.pop %v754
        %v756 = vmul.f32 %v741, 1.442695
        %v757 = vpow.pop %v756
        %v758 = vsel %vm709, %v743, 0.0
        %759 = vadd.xlane.f32.xlu0 %v758
        %v760 = vpop.xlane.xlu0 %759
        %v761 = vsel %vm709, %v745, 0.0
        %762 = vadd.xlane.f32.xlu0 %v761
        %v763 = vpop.xlane.xlu0 %762
        %v764 = vsel %vm709, %v747, 0.0
        %765 = vadd.xlane.f32.xlu0 %v764
        %v766 = vpop.xlane.xlu0 %765
        %v767 = vsel %vm709, %v749, 0.0
        %768 = vadd.xlane.f32.xlu0 %v767
        %v769 = vpop.xlane.xlu0 %768
        %v770 = vsel %vm709, %v751, 0.0
        %771 = vadd.xlane.f32.xlu0 %v770
        %v772 = vpop.xlane.xlu0 %771
        %v773 = vsel %vm709, %v753, 0.0
        %774 = vadd.xlane.f32.xlu0 %v773
        %v775 = vpop.xlane.xlu0 %774
        %v776 = vsel %vm709, %v755, 0.0
        %777 = vadd.xlane.f32.xlu0 %v776
        %v778 = vpop.xlane.xlu0 %777
        %v779 = vsel %vm709, %v757, 0.0
        %780 = vadd.xlane.f32.xlu0 %v779
        %v781 = vpop.xlane.xlu0 %780
        %v782 = vrcp.pop %v760
        %v783 = vrcp.pop %v763
        %v784 = vrcp.pop %v766
        %v785 = vrcp.pop %v769
        %v786 = vrcp.pop %v772
        %v787 = vrcp.pop %v775
        %v788 = vrcp.pop %v778
        %v789 = vrcp.pop %v781
        %v790 = vmul.f32 %v743, %v782
        %v791 = vmul.f32 %v745, %v783
        %v792 = vmul.f32 %v747, %v784
        %v793 = vmul.f32 %v749, %v785
        %v794 = vmul.f32 %v751, %v786
        %v795 = vmul.f32 %v753, %v787
        %v796 = vmul.f32 %v755, %v788
        %v797 = vmul.f32 %v757, %v789
        %v798 = vpack.c.bf16 %v791, %v790
        %v799 = vpack.c.bf16 %v793, %v792
        %v800 = vpack.c.bf16 %v795, %v794
        %v801 = vpack.c.bf16 %v797, %v796
        %v803 = vsel %vm709, %v798, 0
        %805 = vmatprep.subr.bf16.mxu0 0
        %806 = vmatpush1.bf16.msra.mxu0 %v495
        %807 = vmatprep.subr.bf16.mxu0 0
        %808 = vmatpush1.bf16.msra.mxu0 0
        %809 = vmatprep.subr.bf16.mxu0 0
        %810 = vmatpush1.bf16.msra.mxu0 0
        %811 = vmatprep.subr.bf16.mxu0 0
        %812 = vmatpush1.bf16.msra.mxu0 0
        %813 = vmatprep.subr.bf16.mxu0 0
        %814 = vmatpush1.bf16.msra.mxu0 0
        %815 = vmatprep.subr.bf16.mxu0 0
        %816 = vmatpush1.bf16.msra.mxu0 0
        %817 = vmatprep.subr.bf16.mxu0 0
        %818 = vmatpush1.bf16.msra.mxu0 0
        %819 = vmatprep.subr.bf16.mxu0 0
        %820 = vmatpush1.bf16.msra.mxu0 0
        %821 = vmatprep.subr.bf16.mxu0 0
        %822 = vmatpush1.bf16.msra.mxu0 0
        %823 = vmatprep.subr.bf16.mxu0 0
        %824 = vmatpush1.bf16.msra.mxu0 0
        %825 = vmatprep.subr.bf16.mxu0 0
        %826 = vmatpush1.bf16.msra.mxu0 0
        %827 = vmatprep.subr.bf16.mxu0 0
        %828 = vmatpush1.bf16.msra.mxu0 0
        %829 = vmatprep.subr.bf16.mxu0 0
        %830 = vmatpush1.bf16.msra.mxu0 0
        %831 = vmatprep.subr.bf16.mxu0 0
        %832 = vmatpush1.bf16.msra.mxu0 0
        %833 = vmatprep.subr.bf16.mxu0 0
        %834 = vmatpush1.bf16.msra.mxu0 0
        %835 = vmatprep.subr.bf16.mxu0 0
        %836 = vmatpush1.bf16.msra.mxu0 0
        %837 = vmatprep.mubr.bf16.mxu0 0
        %838 = vmatmul.mubr.bf16.gmra.mrb[0].mxu0 %v803
        %v839 = vpop.f32.mrb[0].mxu0
        %v840 = vadd.f32 0.0, %v839
        %v841 = vpop.f32.mrb[0].mxu0
        %v842 = vpop.f32.mrb[0].mxu0
        %v843 = vadd.f32 0.0, %v842
        %v844 = vpop.f32.mrb[0].mxu0
        %845 = vdwg.mxu0
        %v847 = vsel %vm709, %v799, 0
        %849 = vmatprep.subr.bf16.mxu0 0
        %850 = vmatpush1.bf16.msra.mxu0 %v512
        %851 = vmatprep.subr.bf16.mxu0 0
        %852 = vmatpush1.bf16.msra.mxu0 0
        %853 = vmatprep.subr.bf16.mxu0 0
        %854 = vmatpush1.bf16.msra.mxu0 0
        %855 = vmatprep.subr.bf16.mxu0 0
        %856 = vmatpush1.bf16.msra.mxu0 0
        %857 = vmatprep.subr.bf16.mxu0 0
        %858 = vmatpush1.bf16.msra.mxu0 0
        %859 = vmatprep.subr.bf16.mxu0 0
        %860 = vmatpush1.bf16.msra.mxu0 0
        %861 = vmatprep.subr.bf16.mxu0 0
        %862 = vmatpush1.bf16.msra.mxu0 0
        %863 = vmatprep.subr.bf16.mxu0 0
        %864 = vmatpush1.bf16.msra.mxu0 0
        %865 = vmatprep.subr.bf16.mxu0 0
        %866 = vmatpush1.bf16.msra.mxu0 0
        %867 = vmatprep.subr.bf16.mxu0 0
        %868 = vmatpush1.bf16.msra.mxu0 0
        %869 = vmatprep.subr.bf16.mxu0 0
        %870 = vmatpush1.bf16.msra.mxu0 0
        %871 = vmatprep.subr.bf16.mxu0 0
        %872 = vmatpush1.bf16.msra.mxu0 0
        %873 = vmatprep.subr.bf16.mxu0 0
        %874 = vmatpush1.bf16.msra.mxu0 0
        %875 = vmatprep.subr.bf16.mxu0 0
        %876 = vmatpush1.bf16.msra.mxu0 0
        %877 = vmatprep.subr.bf16.mxu0 0
        %878 = vmatpush1.bf16.msra.mxu0 0
        %879 = vmatprep.subr.bf16.mxu0 0
        %880 = vmatpush1.bf16.msra.mxu0 0
        %881 = vmatprep.mubr.bf16.mxu0 0
        %882 = vmatmul.mubr.bf16.gmra.mrb[0].mxu0 %v847
        %v883 = vpop.f32.mrb[0].mxu0
        %v884 = vadd.f32 0.0, %v883
        %v885 = vpop.f32.mrb[0].mxu0
        %v886 = vpop.f32.mrb[0].mxu0
        %v887 = vadd.f32 0.0, %v886
        %v888 = vpop.f32.mrb[0].mxu0
        %889 = vdwg.mxu0
        %v891 = vsel %vm709, %v800, 0
        %893 = vmatprep.subr.bf16.mxu0 0
        %894 = vmatpush1.bf16.msra.mxu0 %v515
        %895 = vmatprep.subr.bf16.mxu0 0
        %896 = vmatpush1.bf16.msra.mxu0 0
        %897 = vmatprep.subr.bf16.mxu0 0
        %898 = vmatpush1.bf16.msra.mxu0 0
        %899 = vmatprep.subr.bf16.mxu0 0
        %900 = vmatpush1.bf16.msra.mxu0 0
        %901 = vmatprep.subr.bf16.mxu0 0
        %902 = vmatpush1.bf16.msra.mxu0 0
        %903 = vmatprep.subr.bf16.mxu0 0
        %904 = vmatpush1.bf16.msra.mxu0 0
        %905 = vmatprep.subr.bf16.mxu0 0
        %906 = vmatpush1.bf16.msra.mxu0 0
        %907 = vmatprep.subr.bf16.mxu0 0
        %908 = vmatpush1.bf16.msra.mxu0 0
        %909 = vmatprep.subr.bf16.mxu0 0
        %910 = vmatpush1.bf16.msra.mxu0 0
        %911 = vmatprep.subr.bf16.mxu0 0
        %912 = vmatpush1.bf16.msra.mxu0 0
        %913 = vmatprep.subr.bf16.mxu0 0
        %914 = vmatpush1.bf16.msra.mxu0 0
        %915 = vmatprep.subr.bf16.mxu0 0
        %916 = vmatpush1.bf16.msra.mxu0 0
        %917 = vmatprep.subr.bf16.mxu0 0
        %918 = vmatpush1.bf16.msra.mxu0 0
        %919 = vmatprep.subr.bf16.mxu0 0
        %920 = vmatpush1.bf16.msra.mxu0 0
        %921 = vmatprep.subr.bf16.mxu0 0
        %922 = vmatpush1.bf16.msra.mxu0 0
        %923 = vmatprep.subr.bf16.mxu0 0
        %924 = vmatpush1.bf16.msra.mxu0 0
        %925 = vmatprep.mubr.bf16.mxu0 0
        %926 = vmatmul.mubr.bf16.gmra.mrb[0].mxu0 %v891
        %v927 = vpop.f32.mrb[0].mxu0
        %v928 = vadd.f32 0.0, %v927
        %v929 = vpop.f32.mrb[0].mxu0
        %v930 = vpop.f32.mrb[0].mxu0
        %v931 = vadd.f32 0.0, %v930
        %v932 = vpop.f32.mrb[0].mxu0
        %933 = vdwg.mxu0
        %v935 = vsel %vm709, %v801, 0
        %937 = vmatprep.subr.bf16.mxu0 0
        %938 = vmatpush1.bf16.msra.mxu0 %v518
        %939 = vmatprep.subr.bf16.mxu0 0
        %940 = vmatpush1.bf16.msra.mxu0 0
        %941 = vmatprep.subr.bf16.mxu0 0
        %942 = vmatpush1.bf16.msra.mxu0 0
        %943 = vmatprep.subr.bf16.mxu0 0
        %944 = vmatpush1.bf16.msra.mxu0 0
        %945 = vmatprep.subr.bf16.mxu0 0
        %946 = vmatpush1.bf16.msra.mxu0 0
        %947 = vmatprep.subr.bf16.mxu0 0
        %948 = vmatpush1.bf16.msra.mxu0 0
        %949 = vmatprep.subr.bf16.mxu0 0
        %950 = vmatpush1.bf16.msra.mxu0 0
        %951 = vmatprep.subr.bf16.mxu0 0
        %952 = vmatpush1.bf16.msra.mxu0 0
        %953 = vmatprep.subr.bf16.mxu0 0
        %954 = vmatpush1.bf16.msra.mxu0 0
        %955 = vmatprep.subr.bf16.mxu0 0
        %956 = vmatpush1.bf16.msra.mxu0 0
        %957 = vmatprep.subr.bf16.mxu0 0
        %958 = vmatpush1.bf16.msra.mxu0 0
        %959 = vmatprep.subr.bf16.mxu0 0
        %960 = vmatpush1.bf16.msra.mxu0 0
        %961 = vmatprep.subr.bf16.mxu0 0
        %962 = vmatpush1.bf16.msra.mxu0 0
        %963 = vmatprep.subr.bf16.mxu0 0
        %964 = vmatpush1.bf16.msra.mxu0 0
        %965 = vmatprep.subr.bf16.mxu0 0
        %966 = vmatpush1.bf16.msra.mxu0 0
        %967 = vmatprep.subr.bf16.mxu0 0
        %968 = vmatpush1.bf16.msra.mxu0 0
        %969 = vmatprep.mubr.bf16.mxu0 0
        %970 = vmatmul.mubr.bf16.gmra.mrb[0].mxu0 %v935
        %v971 = vpop.f32.mrb[0].mxu0
        %v972 = vadd.f32 0.0, %v971
        %v973 = vpop.f32.mrb[0].mxu0
        %v974 = vpop.f32.mrb[0].mxu0
        %v975 = vadd.f32 0.0, %v974
        %v976 = vpop.f32.mrb[0].mxu0
        %977 = vdwg.mxu0
        %980 = vrot.lane.b32.xlu0 %v884, 32
        %v981 = vpop.permute.xlu0 %980
        %982 = vrot.lane.b32.xlu0 %v887, 32
        %v983 = vpop.permute.xlu0 %982
        %988 = vrot.lane.b32.xlu0 %v928, 64
        %v989 = vpop.permute.xlu0 %988
        %990 = vrot.lane.b32.xlu0 %v931, 64
        %v991 = vpop.permute.xlu0 %990
        %996 = vrot.lane.b32.xlu0 %v972, 96
        %v997 = vpop.permute.xlu0 %996
        %998 = vrot.lane.b32.xlu0 %v975, 96
        %v999 = vpop.permute.xlu0 %998
        %v1002 = vsel %vm520, %v840, %v981
        %v1003 = vsel %vm520, %v843, %v983
        %vm1004 = vcmask 523264
        %v1005 = vsel %vm1004, %v1002, %v989
        %v1006 = vsel %vm1004, %v1003, %v991
        %vm1007 = vcmask 785408
        %v1008 = vsel %vm1007, %v1005, %v997
        %v1009 = vsel %vm1007, %v1006, %v999
        %v1010 = vpack.c.bf16 %v1009, %v1008
        %v1011 = vld [vmem:[#allocation7] sm:$0xf]
        %v1012 = vld [vmem:[#allocation7 + $0x4] sm:$0xf]
        %v1013 = vld [vmem:[#allocation7 + $0x8] sm:$0xf]
        %v1014 = vld [vmem:[#allocation7 + $0xc] sm:$0xf]
        %v1015 = vld [vmem:[#allocation7 + $0x10] sm:$0xf]
        %v1016 = vld [vmem:[#allocation7 + $0x14] sm:$0xf]
        %v1017 = vld [vmem:[#allocation7 + $0x18] sm:$0xf]
        %v1018 = vld [vmem:[#allocation7 + $0x1c] sm:$0xf]
        %v1019 = vld [vmem:[#allocation7 + $0x20] sm:$0xf]
        %v1020 = vld [vmem:[#allocation7 + $0x24] sm:$0xf]
        %v1021 = vld [vmem:[#allocation7 + $0x28] sm:$0xf]
        %v1022 = vld [vmem:[#allocation7 + $0x2c] sm:$0xf]
        %v1023 = vld [vmem:[#allocation7 + $0x30] sm:$0xf]
        %v1024 = vld [vmem:[#allocation7 + $0x34] sm:$0xf]
        %v1025 = vld [vmem:[#allocation7 + $0x38] sm:$0xf]
        %v1026 = vld [vmem:[#allocation7 + $0x3c] sm:$0xf]
        %v1027 = vld [vmem:[%s3] sm:$0x1]
        %v1029 = vlaneseq
        %v1030 = vshrl.u32 %v1029, 7
        %v1031 = vsub.s32 0, %v1030
        %v1032 = vrot.slane %v1027, %v1031
        %v1050 = vunpack.c.l.b16 %v1011
        %v1051 = vunpack.c.l.b16 %v1012
        %v1052 = vunpack.c.l.b16 %v1013
        %v1053 = vunpack.c.l.b16 %v1014
        %v1054 = vunpack.c.l.b16 %v1015
        %v1055 = vunpack.c.l.b16 %v1016
        %v1056 = vunpack.c.l.b16 %v1017
        %v1057 = vunpack.c.l.b16 %v1018
        %v1058 = vunpack.c.l.b16 %v1019
        %v1059 = vunpack.c.l.b16 %v1020
        %v1060 = vunpack.c.l.b16 %v1021
        %v1061 = vunpack.c.l.b16 %v1022
        %v1062 = vunpack.c.l.b16 %v1023
        %v1063 = vunpack.c.l.b16 %v1024
        %v1064 = vunpack.c.l.b16 %v1025
        %v1065 = vunpack.c.l.b16 %v1026
        %v1066 = vpack.c.b16 %v1051, %v1050
        %v1067 = vpack.c.b16 %v1053, %v1052
        %v1068 = vpack.c.b16 %v1055, %v1054
        %v1069 = vpack.c.b16 %v1057, %v1056
        %v1070 = vpack.c.b16 %v1059, %v1058
        %v1071 = vpack.c.b16 %v1061, %v1060
        %v1072 = vpack.c.b16 %v1063, %v1062
        %v1073 = vpack.c.b16 %v1065, %v1064
        %1082 = vmatprep.subr.bf16.mxu0 0
        %1083 = vmatpush1.bf16.msra.mxu0 %v1066
        %1084 = vmatprep.subr.bf16.mxu0 0
        %1085 = vmatpush1.bf16.msra.mxu0 %v1067
        %1086 = vmatprep.subr.bf16.mxu0 0
        %1087 = vmatpush1.bf16.msra.mxu0 %v1068
        %1088 = vmatprep.subr.bf16.mxu0 0
        %1089 = vmatpush1.bf16.msra.mxu0 %v1069
        %1090 = vmatprep.subr.bf16.mxu0 0
        %1091 = vmatpush1.bf16.msra.mxu0 %v1070
        %1092 = vmatprep.subr.bf16.mxu0 0
        %1093 = vmatpush1.bf16.msra.mxu0 %v1071
        %1094 = vmatprep.subr.bf16.mxu0 0
        %1095 = vmatpush1.bf16.msra.mxu0 %v1072
        %1096 = vmatprep.subr.bf16.mxu0 0
        %1097 = vmatpush1.bf16.msra.mxu0 %v1073
        %1098 = vmatprep.subr.bf16.mxu0 0
        %1099 = vmatpush1.bf16.msra.mxu0 0
        %1100 = vmatprep.subr.bf16.mxu0 0
        %1101 = vmatpush1.bf16.msra.mxu0 0
        %1102 = vmatprep.subr.bf16.mxu0 0
        %1103 = vmatpush1.bf16.msra.mxu0 0
        %1104 = vmatprep.subr.bf16.mxu0 0
        %1105 = vmatpush1.bf16.msra.mxu0 0
        %1106 = vmatprep.subr.bf16.mxu0 0
        %1107 = vmatpush1.bf16.msra.mxu0 0
        %1108 = vmatprep.subr.bf16.mxu0 0
        %1109 = vmatpush1.bf16.msra.mxu0 0
        %1110 = vmatprep.subr.bf16.mxu0 0
        %1111 = vmatpush1.bf16.msra.mxu0 0
        %1112 = vmatprep.subr.bf16.mxu0 0
        %1113 = vmatpush1.bf16.msra.mxu0 0
        %1114 = vmatprep.mubr.bf16.mxu0 0
        %1115 = vmatmul.mubr.bf16.gmra.mrb[0].mxu0 %v1010
        %v1116 = vpop.f32.mrb[0].mxu0
        %v1117 = vadd.f32 %v1032, %v1116
        %v1118 = vpop.f32.mrb[0].mxu0
        %v1119 = vpop.f32.mrb[0].mxu0
        %v1120 = vadd.f32 %v1032, %v1119
        %v1121 = vpop.f32.mrb[0].mxu0
        %1122 = vdwg.mxu0
        %1123 = vst [vmem:[%s244] sm:$0xff] %v1117
        %1124 = vst [vmem:[%s244 + $0x8] sm:$0xff] %v1120
        %s1125 = sand.u32 %s119, 1
        %s1126 = scalar_lea.sflag [#allocation4], %s1125
        %s1127 = sand.u32 %s119, 1
        %s1128 = smul.addr %s1127, 16
        %s1129 = scalar_lea.vmem [#allocation8], %s1128
        // Predicated region
        $region49: #{tpu_custom_call.1} parent=35 // pred_check
          %p1130 = pneg %p129
        $region50: #{tpu_custom_call.1} parent=35 // pred_check_branch
          %1132 = sbr.rel (%p1130) target = $region52
        $region51: #{tpu_custom_call.1} parent=35 // pred_region
          %s1134 = ssub.s32 256, 256
          %1135 = vsyncadd %s1126, %s1134
          %s1136 = smul.addr %s22, 2
          %s1137 = smul.addr %s1136, 128
          %s1138 = scalar_lea.hbm %s4, %s1137
          %s1139 = sshll.u32 %s1129, 4
          %s1140 = int_to_ptr.vmem [resolvable:$true] %s1139
          %1145 = dma.vmem_to_hbm [thread:$0]  %s1140, 256, %s1138, %s1126, 128, 128, 8
        $region52: #{tpu_custom_call.1} parent=35 // pred_fallthru
          _
      $region36: #{tpu_custom_call.1} parent=5 // pred_fallthru
        _
      %p1146 = scmp.le.s32.totalorder 2, %s17
      // Predicated region
      $region53: #{tpu_custom_call.1} parent=5 // pred_check
        %p1147 = pneg %p1146
      $region54: #{tpu_custom_call.1} parent=5 // pred_check_branch
        %1149 = sbr.rel (%p1147) target = $region56
      $region55: #{tpu_custom_call.1} parent=5 // pred_region
        %s1150 = ssub.s32 %s17, 2
        // Predicated region
        $region57: #{tpu_custom_call.1} parent=55 // pred_check
          %p1151 = pneg %p135
        $region58: #{tpu_custom_call.1} parent=55 // pred_check_branch
          %1153 = sbr.rel (%p1151) target = $region60
        $region59: #{tpu_custom_call.1} parent=55 // pred_region
          %s1154 = sand.u32 %s120, 1
          %s1155 = scalar_lea.sflag [#allocation4], %s1154
          %s1156 = sand.u32 %s120, 1
          %s1157 = smul.addr %s1156, 16
          %s1158 = scalar_lea.vmem [#allocation8], %s1157
          %1159 = dma.done %s1155, 256
        $region60: #{tpu_custom_call.1} parent=55 // pred_fallthru
          _
      $region56: #{tpu_custom_call.1} parent=5 // pred_fallthru
        _
    $region6: #{tpu_custom_call.1} parent=1 // loop_footer
      %s21 = sadd.s32 1, %s17
    $region7: #{tpu_custom_call.1} parent=1 // loop_footer_branch
      %16 = sbr.rel target = $region3
    $region8: #{tpu_custom_call.1} parent=1 // loop_exit
      _
    %1160 = vsyncpa [#allocation3], 1
    %s1161 = scalar_lea.sflag [#allocation3], 1
    %1162 = vsyncpa %s1161, 1
    %1163 = vsyncpa [#allocation6], 1
    %1164 = vsyncpa [#allocation4], 1
    %s1165 = scalar_lea.sflag [#allocation4], 1
    %1166 = vsyncpa %s1165, 1

</llo_original>
